<compile_context>
chip_gen: v7x
topology: tpu7x:2x2x1
jax: 0.10.0
libtpu: 0.0.40
codegen_flags: <defaults>
</compile_context>

<pallas_src>
import numpy as np
import jax
import jax.numpy as jnp
from jax import lax
from jax.experimental import pallas as pl
from jax.experimental.pallas import tpu as pltpu


# ------------------------- synthetic opt -------------------------
class _Opt:
    pass


opt = _Opt()
opt.n_sem = 4
opt.xyz = 3
opt.dim_e = 1
opt.hid_size = 16
opt.hid_layer = 2
opt.con_size = 32
opt.input_res = 16
opt.n_prop = 8

NSEM = opt.n_sem
CON = opt.con_size
HID = opt.hid_size * opt.hid_layer          # 32
OUT_SIZE = 2 * opt.xyz + opt.dim_e          # 7   (reg not in {'str','s-t-r'})
ROT_SIZE = 1 * opt.xyz                      # 3
RR = opt.input_res * opt.input_res          # 256

N1 = 256                                    # layer-1 width of y/rot heads
W1_N = 2 * NSEM * N1                        # 2048  (y + rot layer-1, all classes, K=HID)
W2_N = NSEM * 64                            # 256   (y layer-2, 64 lanes/class, K=256)
W3_N = NSEM * 32                            # 128   (y layer-3, 32 lanes/class, K=64)
W4_N = NSEM * 32                            # 128   (y layer-4, 32-lane-aligned/class, K=32)
WR_N = NSEM * 32                            # 128   (rot layer-2, 32-lane-aligned/class, K=256)

# packed-bias lane offsets (all section starts are 128-aligned)
OFF_ENC = 0
OFF_E1 = 128
OFF_E2 = 256
OFF_C = 384
OFF_B1 = 512
OFF_B2 = OFF_B1 + W1_N                      # 2560
OFF_B3 = OFF_B2 + W2_N                      # 2816
OFF_B4 = OFF_B3 + W3_N                      # 2944
OFF_BR = OFF_B4 + W4_N                      # 3072
B_ALL_LEN = OFF_BR + WR_N                   # 3200

# packed-output lane offsets (single (M_pad, 128) slab, one unmasked store)
PK_EMB = 0
PK_CLS = 32
PK_Y = 64
PK_ROT = 96
PK_LANES = 128


# ------------------------- fused Pallas kernel -------------------------
def fused_head_kernel(x_ref, wenc_ref, we1_ref, we2_ref, wc_ref,
                      w1_ref, w2_ref, w3_ref, w4_ref, wr_ref,
                      b_ref, out_ref):
    bf16 = jnp.bfloat16
    f32 = jnp.float32
    m_rows = x_ref.shape[0]

    def mm(a, w_ref_):
        # bf16 MXU operands, f32 accumulation
        return jnp.dot(a, w_ref_[...], preferred_element_type=f32)

    def bias(off, n):
        return b_ref[:, off:off + n]                  # (1, n) f32, broadcasts over rows

    def act(acc, off, n):
        # f32 accumulate + bias + ReLU, then downcast: next MXU operand stays bf16
        return jnp.maximum(acc + bias(off, n), 0.0).astype(bf16)

    x = x_ref[...]                                    # (M, RR) bf16

    # rgb_encoder stand-in: flattened depth -> con_size (no activation)
    d = (mm(x, wenc_ref) + bias(OFF_ENC, CON)).astype(bf16)        # (M, CON)

    # embed_layer: Linear -> ReLU -> Linear -> ReLU
    h = act(mm(d, we1_ref), OFF_E1, HID)
    h = act(mm(h, we2_ref), OFF_E2, HID)                           # (M, HID) bf16

    # cls_linear: Linear -> Softmax(dim=1)   (kept in f32)
    logits = mm(h, wc_ref) + bias(OFF_C, NSEM)                     # (M, NSEM)
    lmax = jnp.max(logits, axis=1, keepdims=True)
    e = jnp.exp(logits - lmax)
    cls = e * pl.reciprocal(jnp.sum(e, axis=1, keepdims=True), approx=True)

    # argmax with torch.max first-max semantics (softmax monotonic -> logits equivalent)
    ids = lax.broadcasted_iota(jnp.int32, logits.shape, 1)
    cls_id = jnp.min(jnp.where(logits >= lmax, ids, NSEM), axis=1, keepdims=True)  # (M,1)

    m_bf = [(cls_id == s).astype(bf16) for s in range(NSEM)]
    m_f = [(cls_id == s).astype(f32) for s in range(NSEM)]

    def select(t, block, masks):
        # per-row selection of the predicted class's lane block (equal-width blocks)
        out = t[:, 0:block] * masks[0]
        for s in range(1, NSEM):
            out = out + t[:, s * block:(s + 1) * block] * masks[s]
        return out

    # y/rot layer 1: all n_sem class heads batched into the N dimension (K=HID, dense)
    t1 = act(mm(h, w1_ref), OFF_B1, W1_N)                          # (M, 2048)
    hy = select(t1[:, :NSEM * N1], N1, m_bf)                       # (M, 256)  class-selected
    hr = select(t1[:, NSEM * N1:], N1, m_bf)                       # (M, 256)

    # y path layers 2..4: class-concat-along-N weights (zero-free, small K),
    # per-row class-block selection after each layer
    t2 = act(mm(hy, w2_ref), OFF_B2, W2_N)                         # (M, 256)
    hy2 = select(t2, 64, m_bf)                                     # (M, 64)
    t3 = act(mm(hy2, w3_ref), OFF_B3, W3_N)                        # (M, 128)
    hy3 = select(t3, 32, m_bf)                                     # (M, 32)
    y_all = mm(hy3, w4_ref) + bias(OFF_B4, W4_N)                   # (M, 128) f32
    y32 = select(y_all, 32, m_f)                                   # (M, 32), lanes >= OUT_SIZE are 0

    # rot path layer 2
    r_all = mm(hr, wr_ref) + bias(OFF_BR, WR_N)                    # (M, 128) f32
    r32 = select(r_all, 32, m_f)                                   # (M, 32), lanes >= ROT_SIZE are 0

    # single lane-dense (M, 128) output slab: [emb | cls | y | rot], one unmasked store
    cls32 = jnp.concatenate([cls, jnp.zeros((m_rows, 32 - NSEM), f32)], axis=1)
    out_ref[...] = jnp.concatenate([h.astype(f32), cls32, y32, r32], axis=1)


# ------------------------- parameters -------------------------
def _lin(key, fan_in, fan_out, stacked=None):
    shape = (fan_in, fan_out) if stacked is None else (stacked, fan_in, fan_out)
    return jax.random.normal(key, shape, jnp.float32) / np.sqrt(fan_in)


def init_params(key):
    ks = jax.random.split(key, 20)
    p = {}
    # rgb_encoder stand-in
    p["Wenc"] = _lin(ks[0], RR, CON)
    p["benc"] = 0.01 * jax.random.normal(ks[10], (1, CON), jnp.float32)
    # embed_layer
    p["We1"] = _lin(ks[1], CON, HID)
    p["be1"] = 0.01 * jax.random.normal(ks[11], (1, HID), jnp.float32)
    p["We2"] = _lin(ks[2], HID, HID)
    p["be2"] = 0.01 * jax.random.normal(ks[12], (1, HID), jnp.float32)
    # cls_linear
    p["Wc"] = _lin(ks[3], HID, NSEM)
    p["bc"] = 0.01 * jax.random.normal(ks[13], (1, NSEM), jnp.float32)
    # y_linear (ModuleList over n_sem): HID->256->64->32->OUT_SIZE
    p["Wy1"] = _lin(ks[4], HID, N1, NSEM)
    p["by1"] = 0.01 * jax.random.normal(ks[14], (NSEM, 1, N1), jnp.float32)
    p["Wy2"] = _lin(ks[5], N1, 64, NSEM)
    p["by2"] = 0.01 * jax.random.normal(ks[15], (NSEM, 1, 64), jnp.float32)
    p["Wy3"] = _lin(ks[6], 64, 32, NSEM)
    p["by3"] = 0.01 * jax.random.normal(ks[16], (NSEM, 1, 32), jnp.float32)
    p["Wy4"] = _lin(ks[7], 32, OUT_SIZE, NSEM)
    p["by4"] = 0.01 * jax.random.normal(ks[17], (NSEM, 1, OUT_SIZE), jnp.float32)
    # rot_linear (ModuleList over n_sem): HID->256->xyz
    p["Wr1"] = _lin(ks[8], HID, N1, NSEM)
    p["br1"] = 0.01 * jax.random.normal(ks[18], (NSEM, 1, N1), jnp.float32)
    p["Wr2"] = _lin(ks[9], N1, ROT_SIZE, NSEM)
    p["br2"] = 0.01 * jax.random.normal(ks[19], (NSEM, 1, ROT_SIZE), jnp.float32)
    return p


def pack_params(p):
    """One-time host packing: dense class-concatenated weights + one bias vector."""
    bf16 = jnp.bfloat16

    def pad128(v):
        return jnp.pad(v, ((0, 0), (0, 128 - v.shape[1])))

    def pad_block(w, b_, width):
        return (jnp.pad(w, ((0, 0), (0, width - w.shape[1]))),
                jnp.pad(b_, ((0, 0), (0, width - b_.shape[1]))))

    # layer 1 (shared K=HID): columns = [Wy1_0..3 | Wr1_0..3], 256 lanes per class
    W1 = jnp.concatenate([p["Wy1"][s] for s in range(NSEM)]
                         + [p["Wr1"][s] for s in range(NSEM)], axis=1)     # (32, 2048)
    b1 = jnp.concatenate([p["by1"][s] for s in range(NSEM)]
                         + [p["br1"][s] for s in range(NSEM)], axis=1)     # (1, 2048)
    # y layer 2..3: dense class-concat along N (no block-diag zeros)
    W2 = jnp.concatenate([p["Wy2"][s] for s in range(NSEM)], axis=1)       # (256, 256)
    b2 = jnp.concatenate([p["by2"][s] for s in range(NSEM)], axis=1)       # (1, 256)
    W3 = jnp.concatenate([p["Wy3"][s] for s in range(NSEM)], axis=1)       # (64, 128)
    b3 = jnp.concatenate([p["by3"][s] for s in range(NSEM)], axis=1)       # (1, 128)
    # y layer 4 / rot layer 2: 32-lane-aligned class blocks (zero-padded tails)
    W4b, b4b = zip(*[pad_block(p["Wy4"][s], p["by4"][s], 32) for s in range(NSEM)])
    W4 = jnp.concatenate(W4b, axis=1)                                      # (32, 128)
    b4 = jnp.concatenate(b4b, axis=1)                                      # (1, 128)
    Wrb, brb = zip(*[pad_block(p["Wr2"][s], p["br2"][s], 32) for s in range(NSEM)])
    Wr = jnp.concatenate(Wrb, axis=1)                                      # (256, 128)
    br = jnp.concatenate(brb, axis=1)                                      # (1, 128)

    b_all = jnp.concatenate(
        [pad128(p["benc"]), pad128(p["be1"]), pad128(p["be2"]), pad128(p["bc"]),
         b1, b2, b3, b4, br], axis=1)                                      # (1, 3200)
    assert b_all.shape == (1, B_ALL_LEN)

    return dict(
        Wenc=p["Wenc"].astype(bf16), We1=p["We1"].astype(bf16),
        We2=p["We2"].astype(bf16), Wc=p["Wc"].astype(bf16),
        W1=W1.astype(bf16), W2=W2.astype(bf16), W3=W3.astype(bf16),
        W4=W4.astype(bf16), Wr=Wr.astype(bf16),
        b_all=b_all.astype(jnp.float32),
    )


# ------------------------- host-side glue (matches module semantics) -------------------------
def compute_max_len_prop(box_gt_idx):
    L = box_gt_idx.shape[2]
    for i in range(L, 0, -1):
        if box_gt_idx[:, :, i - 1].sum() > -box_gt_idx.shape[0]:
            return i
    return 0


def get_target_matched(input_mat, rot_mat, cls_mat, prim_box_2d, num_prop, box_gt_idx):
    B = input_mat.shape[0]
    targets = []
    c_mask_new = np.zeros((B, 1, opt.n_prop), np.float32)
    for i in range(num_prop):
        xs, rs, cs, bs = [], [], [], []
        for b in range(B):
            idx = int(box_gt_idx[b, 0, i])
            keep = 1.0 if idx >= 0 else 0.0
            if idx >= 0:
                c_mask_new[b, 0, i] = 1.0
            xs.append(input_mat[b:b + 1, :, idx] * keep)
            rs.append(rot_mat[b:b + 1, :, idx] * keep)
            cs.append(cls_mat[b:b + 1, 0, idx] * keep)
            bs.append(prim_box_2d[b:b + 1, :, idx] * keep)
        targets.append((np.concatenate(xs, 0), np.concatenate(rs, 0),
                        np.concatenate(cs, 0), np.concatenate(bs, 0)))
    return targets, c_mask_new


# ------------------------- forward wrapper -------------------------
def faster3d_proposal_forward(packed, input_mat, rot_mat, cls_mat, depth,
                              c_mask_mat, prim_box_2d, box_proposal,
                              box_gt_idx, phase="val"):
    B = depth.shape[0]
    m_pad = max(16, ((B + 15) // 16) * 16)            # bf16 sublane tile (16, 128)

    # data-dependent proposal count + target gathering (glue, on host)
    num_prop = compute_max_len_prop(np.asarray(box_gt_idx))
    targets, c_mask_mat_new = get_target_matched(
        np.asarray(input_mat), np.asarray(rot_mat), np.asarray(cls_mat),
        np.asarray(prim_box_2d), num_prop, np.asarray(box_gt_idx))

    # flattened NCHW depth, padded to 16 sublanes, bf16 MXU operands
    x = jnp.reshape(depth, (B, -1)).astype(jnp.float32)
    x = jnp.pad(x, ((0, m_pad - B), (0, 0))).astype(jnp.bfloat16)

    args = (x, packed["Wenc"], packed["We1"], packed["We2"], packed["Wc"],
            packed["W1"], packed["W2"], packed["W3"], packed["W4"], packed["Wr"],
            packed["b_all"])

    flops = 2 * m_pad * (RR * CON + CON * HID + HID * HID + HID * NSEM
                         + HID * W1_N + N1 * W2_N + 64 * W3_N + 32 * W4_N + N1 * WR_N)
    bytes_accessed = int(sum(int(a.size) * a.dtype.itemsize for a in args)
                         + m_pad * PK_LANES * 4)

    packed_out = pl.pallas_call(
        fused_head_kernel,
        out_shape=jax.ShapeDtypeStruct((m_pad, PK_LANES), jnp.float32),
        in_specs=[pl.BlockSpec(memory_space=pltpu.MemorySpace.VMEM) for _ in args],
        out_specs=pl.BlockSpec(memory_space=pltpu.MemorySpace.VMEM),
        cost_estimate=pl.CostEstimate(flops=flops, transcendentals=m_pad * NSEM,
                                      bytes_accessed=bytes_accessed),
    )(*args)

    emb = packed_out[:B, PK_EMB:PK_EMB + HID]
    cls = packed_out[:B, PK_CLS:PK_CLS + NSEM]
    y = packed_out[:B, PK_Y:PK_Y + OUT_SIZE]
    rot = packed_out[:B, PK_ROT:PK_ROT + ROT_SIZE]

    # The ROI feature stand-in is the broadcast global encoding, so every proposal
    # shares the same head outputs; only the 2-D box differs per proposal.
    outputs = [(y, rot, cls, box_proposal[:, :, i]) for i in range(num_prop)]
    _embeddings = [emb for _ in range(num_prop)]      # unused (opt.refine is None)
    del _embeddings

    # opt.refine is None and opt.demo is None -> return as-is
    return outputs, (targets, c_mask_mat_new)


# ------------------------- main -------------------------
if __name__ == "__main__":
    key = jax.random.PRNGKey(0)
    k_par, k_in, k_rot, k_cls, k_dep, k_box, k_prop = jax.random.split(key, 7)

    B = 2
    L = 8                       # max sequence length of ground-truth primitives
    F = 10                      # primitive parameter width of input_mat

    params = init_params(k_par)
    packed = pack_params(params)

    input_mat = jax.random.normal(k_in, (B, F, L), jnp.float32)
    rot_mat = jax.random.normal(k_rot, (B, 3, L), jnp.float32)
    cls_mat = jax.random.randint(k_cls, (B, 1, L), 0, NSEM).astype(jnp.float32)
    depth = jax.random.normal(k_dep, (B, 1, opt.input_res, opt.input_res), jnp.float32)
    c_mask_mat = jnp.ones((B, 1, L), jnp.float32)
    prim_box_2d = jax.random.uniform(k_box, (B, 4, L), jnp.float32)
    box_proposal = jax.random.uniform(k_prop, (B, 4, opt.n_prop), jnp.float32)
    box_gt_idx = jnp.array(
        [[[0, 1, 2, 3, -1, 4, -1, -1]],
         [[1, 0, 3, -1, 2, -1, -1, -1]]], dtype=jnp.int32)   # -> num_prop = 6

    outputs, (targets, c_mask_new) = faster3d_proposal_forward(
        packed, input_mat, rot_mat, cls_mat, depth, c_mask_mat,
        prim_box_2d, box_proposal, box_gt_idx, phase="val")

    for (y, rot, cls, box2d) in outputs:
        jax.block_until_ready(y)
        jax.block_until_ready(rot)
        jax.block_until_ready(cls)

    assert len(outputs) == 6
    assert outputs[0][0].shape == (B, OUT_SIZE)
    assert outputs[0][1].shape == (B, ROT_SIZE)
    assert outputs[0][2].shape == (B, NSEM)
    assert outputs[0][3].shape == (B, 4)
    print("KERNEL_OK")
</pallas_src>

<mosaic_0001>
module attributes {stable_mosaic.version = 11 : i64} {
  func.func @fused_head_kernel(%arg0: memref<16x256xbf16, #tpu.memory_space<vmem>>, %arg1: memref<256x32xbf16, #tpu.memory_space<vmem>>, %arg2: memref<32x32xbf16, #tpu.memory_space<vmem>>, %arg3: memref<32x32xbf16, #tpu.memory_space<vmem>>, %arg4: memref<32x4xbf16, #tpu.memory_space<vmem>>, %arg5: memref<32x2048xbf16, #tpu.memory_space<vmem>>, %arg6: memref<256x256xbf16, #tpu.memory_space<vmem>>, %arg7: memref<64x128xbf16, #tpu.memory_space<vmem>>, %arg8: memref<32x128xbf16, #tpu.memory_space<vmem>>, %arg9: memref<256x128xbf16, #tpu.memory_space<vmem>>, %arg10: memref<1x3200xf32, #tpu.memory_space<vmem>>, %arg11: memref<16x128xf32, #tpu.memory_space<vmem>>) attributes {dimension_semantics = [], scalar_prefetch = 0 : i64, scratch_operands = 0 : i64, tpu.core_type = #tpu.core_type<tc>} {
    %c0 = arith.constant 0 : index
    %c0_0 = arith.constant 0 : index
    %0 = vector.load %arg0[%c0, %c0_0] : memref<16x256xbf16, #tpu.memory_space<vmem>>, vector<16x256xbf16>
    %c0_1 = arith.constant 0 : index
    %c0_2 = arith.constant 0 : index
    %1 = vector.load %arg1[%c0_1, %c0_2] : memref<256x32xbf16, #tpu.memory_space<vmem>>, vector<256x32xbf16>
    %cst = arith.constant dense<0.000000e+00> : vector<16x32xf32>
    %2 = tpu.matmul %0, %1, %cst {dimension_numbers = #tpu.dot_dimension_numbers<[1], [0], [0], [1], [0, 0, 1, 1], [], []>} : vector<16x256xbf16>, vector<256x32xbf16>, vector<16x32xf32> -> vector<16x32xf32>
    %c0_3 = arith.constant 0 : index
    %c0_4 = arith.constant 0 : index
    %3 = vector.load %arg10[%c0_3, %c0_4] : memref<1x3200xf32, #tpu.memory_space<vmem>>, vector<1x32xf32>
    %4 = vector.broadcast %3 : vector<1x32xf32> to vector<16x32xf32>
    %5 = arith.addf %2, %4 : vector<16x32xf32>
    %6 = arith.truncf %5 : vector<16x32xf32> to vector<16x32xbf16>
    %c0_5 = arith.constant 0 : index
    %c0_6 = arith.constant 0 : index
    %7 = vector.load %arg2[%c0_5, %c0_6] : memref<32x32xbf16, #tpu.memory_space<vmem>>, vector<32x32xbf16>
    %cst_7 = arith.constant dense<0.000000e+00> : vector<16x32xf32>
    %8 = tpu.matmul %6, %7, %cst_7 {dimension_numbers = #tpu.dot_dimension_numbers<[1], [0], [0], [1], [0, 0, 1, 1], [], []>} : vector<16x32xbf16>, vector<32x32xbf16>, vector<16x32xf32> -> vector<16x32xf32>
    %c0_8 = arith.constant 0 : index
    %c128 = arith.constant 128 : index
    %9 = vector.load %arg10[%c0_8, %c128] : memref<1x3200xf32, #tpu.memory_space<vmem>>, vector<1x32xf32>
    %10 = vector.broadcast %9 : vector<1x32xf32> to vector<16x32xf32>
    %11 = arith.addf %8, %10 : vector<16x32xf32>
    %cst_9 = arith.constant 0.000000e+00 : f32
    %12 = vector.broadcast %cst_9 : f32 to vector<16x32xf32>
    %13 = arith.maximumf %11, %12 : vector<16x32xf32>
    %14 = arith.truncf %13 : vector<16x32xf32> to vector<16x32xbf16>
    %c0_10 = arith.constant 0 : index
    %c0_11 = arith.constant 0 : index
    %15 = vector.load %arg3[%c0_10, %c0_11] : memref<32x32xbf16, #tpu.memory_space<vmem>>, vector<32x32xbf16>
    %cst_12 = arith.constant dense<0.000000e+00> : vector<16x32xf32>
    %16 = tpu.matmul %14, %15, %cst_12 {dimension_numbers = #tpu.dot_dimension_numbers<[1], [0], [0], [1], [0, 0, 1, 1], [], []>} : vector<16x32xbf16>, vector<32x32xbf16>, vector<16x32xf32> -> vector<16x32xf32>
    %c0_13 = arith.constant 0 : index
    %c256 = arith.constant 256 : index
    %17 = vector.load %arg10[%c0_13, %c256] : memref<1x3200xf32, #tpu.memory_space<vmem>>, vector<1x32xf32>
    %18 = vector.broadcast %17 : vector<1x32xf32> to vector<16x32xf32>
    %19 = arith.addf %16, %18 : vector<16x32xf32>
    %cst_14 = arith.constant 0.000000e+00 : f32
    %20 = vector.broadcast %cst_14 : f32 to vector<16x32xf32>
    %21 = arith.maximumf %19, %20 : vector<16x32xf32>
    %22 = arith.truncf %21 : vector<16x32xf32> to vector<16x32xbf16>
    %c0_15 = arith.constant 0 : index
    %c0_16 = arith.constant 0 : index
    %23 = vector.load %arg4[%c0_15, %c0_16] : memref<32x4xbf16, #tpu.memory_space<vmem>>, vector<32x4xbf16>
    %cst_17 = arith.constant dense<0.000000e+00> : vector<16x4xf32>
    %24 = tpu.matmul %22, %23, %cst_17 {dimension_numbers = #tpu.dot_dimension_numbers<[1], [0], [0], [1], [0, 0, 1, 1], [], []>} : vector<16x32xbf16>, vector<32x4xbf16>, vector<16x4xf32> -> vector<16x4xf32>
    %c0_18 = arith.constant 0 : index
    %c384 = arith.constant 384 : index
    %25 = vector.load %arg10[%c0_18, %c384] : memref<1x3200xf32, #tpu.memory_space<vmem>>, vector<1x4xf32>
    %26 = vector.broadcast %25 : vector<1x4xf32> to vector<16x4xf32>
    %27 = arith.addf %24, %26 : vector<16x4xf32>
    %cst_19 = arith.constant dense<0xFF800000> : vector<16xf32>
    %28 = vector.multi_reduction <maximumf>, %27, %cst_19 [1] : vector<16x4xf32> to vector<16xf32>
    %29 = vector.shape_cast %28 : vector<16xf32> to vector<16x1xf32>
    %30 = vector.broadcast %29 : vector<16x1xf32> to vector<16x4xf32>
    %31 = arith.subf %27, %30 : vector<16x4xf32>
    %32 = math.exp %31 : vector<16x4xf32>
    %cst_20 = arith.constant dense<0.000000e+00> : vector<16xf32>
    %33 = vector.multi_reduction <add>, %32, %cst_20 [1] : vector<16x4xf32> to vector<16xf32>
    %34 = vector.shape_cast %33 : vector<16xf32> to vector<16x1xf32>
    %35 = tpu.reciprocal %34 {approx = true} : vector<16x1xf32> -> vector<16x1xf32>
    %36 = vector.broadcast %35 : vector<16x1xf32> to vector<16x4xf32>
    %37 = arith.mulf %32, %36 : vector<16x4xf32>
    %38 = tpu.iota {dimensions = array<i32: 1>} : vector<16x4xi32>
    %39 = vector.broadcast %29 : vector<16x1xf32> to vector<16x4xf32>
    %40 = arith.cmpf oge, %27, %39 : vector<16x4xf32>
    %c4_i32 = arith.constant 4 : i32
    %41 = vector.broadcast %c4_i32 : i32 to vector<16x4xi32>
    %42 = arith.select %40, %38, %41 : vector<16x4xi1>, vector<16x4xi32>
    %cst_21 = arith.constant dense<2147483647> : vector<16xi32>
    %43 = vector.multi_reduction <minsi>, %42, %cst_21 [1] : vector<16x4xi32> to vector<16xi32>
    %44 = vector.shape_cast %43 : vector<16xi32> to vector<16x1xi32>
    %c0_i32 = arith.constant 0 : i32
    %45 = vector.broadcast %c0_i32 : i32 to vector<16x1xi32>
    %46 = arith.cmpi eq, %44, %45 : vector<16x1xi32>
    %47 = arith.extui %46 : vector<16x1xi1> to vector<16x1xi32>
    %48 = arith.sitofp %47 : vector<16x1xi32> to vector<16x1xf32>
    %49 = arith.truncf %48 : vector<16x1xf32> to vector<16x1xbf16>
    %c1_i32 = arith.constant 1 : i32
    %50 = vector.broadcast %c1_i32 : i32 to vector<16x1xi32>
    %51 = arith.cmpi eq, %44, %50 : vector<16x1xi32>
    %52 = arith.extui %51 : vector<16x1xi1> to vector<16x1xi32>
    %53 = arith.sitofp %52 : vector<16x1xi32> to vector<16x1xf32>
    %54 = arith.truncf %53 : vector<16x1xf32> to vector<16x1xbf16>
    %c2_i32 = arith.constant 2 : i32
    %55 = vector.broadcast %c2_i32 : i32 to vector<16x1xi32>
    %56 = arith.cmpi eq, %44, %55 : vector<16x1xi32>
    %57 = arith.extui %56 : vector<16x1xi1> to vector<16x1xi32>
    %58 = arith.sitofp %57 : vector<16x1xi32> to vector<16x1xf32>
    %59 = arith.truncf %58 : vector<16x1xf32> to vector<16x1xbf16>
    %c3_i32 = arith.constant 3 : i32
    %60 = vector.broadcast %c3_i32 : i32 to vector<16x1xi32>
    %61 = arith.cmpi eq, %44, %60 : vector<16x1xi32>
    %62 = arith.extui %61 : vector<16x1xi1> to vector<16x1xi32>
    %63 = arith.sitofp %62 : vector<16x1xi32> to vector<16x1xf32>
    %64 = arith.truncf %63 : vector<16x1xf32> to vector<16x1xbf16>
    %c0_i32_22 = arith.constant 0 : i32
    %65 = vector.broadcast %c0_i32_22 : i32 to vector<16x1xi32>
    %66 = arith.cmpi eq, %44, %65 : vector<16x1xi32>
    %67 = arith.extui %66 : vector<16x1xi1> to vector<16x1xi32>
    %68 = arith.sitofp %67 : vector<16x1xi32> to vector<16x1xf32>
    %c1_i32_23 = arith.constant 1 : i32
    %69 = vector.broadcast %c1_i32_23 : i32 to vector<16x1xi32>
    %70 = arith.cmpi eq, %44, %69 : vector<16x1xi32>
    %71 = arith.extui %70 : vector<16x1xi1> to vector<16x1xi32>
    %72 = arith.sitofp %71 : vector<16x1xi32> to vector<16x1xf32>
    %c2_i32_24 = arith.constant 2 : i32
    %73 = vector.broadcast %c2_i32_24 : i32 to vector<16x1xi32>
    %74 = arith.cmpi eq, %44, %73 : vector<16x1xi32>
    %75 = arith.extui %74 : vector<16x1xi1> to vector<16x1xi32>
    %76 = arith.sitofp %75 : vector<16x1xi32> to vector<16x1xf32>
    %c3_i32_25 = arith.constant 3 : i32
    %77 = vector.broadcast %c3_i32_25 : i32 to vector<16x1xi32>
    %78 = arith.cmpi eq, %44, %77 : vector<16x1xi32>
    %79 = arith.extui %78 : vector<16x1xi1> to vector<16x1xi32>
    %80 = arith.sitofp %79 : vector<16x1xi32> to vector<16x1xf32>
    %c0_26 = arith.constant 0 : index
    %c0_27 = arith.constant 0 : index
    %81 = vector.load %arg5[%c0_26, %c0_27] : memref<32x2048xbf16, #tpu.memory_space<vmem>>, vector<32x2048xbf16>
    %cst_28 = arith.constant dense<0.000000e+00> : vector<16x2048xf32>
    %82 = tpu.matmul %22, %81, %cst_28 {dimension_numbers = #tpu.dot_dimension_numbers<[1], [0], [0], [1], [0, 0, 1, 1], [], []>} : vector<16x32xbf16>, vector<32x2048xbf16>, vector<16x2048xf32> -> vector<16x2048xf32>
    %c0_29 = arith.constant 0 : index
    %c512 = arith.constant 512 : index
    %83 = vector.load %arg10[%c0_29, %c512] : memref<1x3200xf32, #tpu.memory_space<vmem>>, vector<1x2048xf32>
    %84 = vector.broadcast %83 : vector<1x2048xf32> to vector<16x2048xf32>
    %85 = arith.addf %82, %84 : vector<16x2048xf32>
    %cst_30 = arith.constant 0.000000e+00 : f32
    %86 = vector.broadcast %cst_30 : f32 to vector<16x2048xf32>
    %87 = arith.maximumf %85, %86 : vector<16x2048xf32>
    %88 = arith.truncf %87 : vector<16x2048xf32> to vector<16x2048xbf16>
    %89 = vector.extract_strided_slice %88 {offsets = [0, 0], sizes = [16, 1024], strides = [1, 1]} : vector<16x2048xbf16> to vector<16x1024xbf16>
    %90 = vector.extract_strided_slice %89 {offsets = [0, 0], sizes = [16, 256], strides = [1, 1]} : vector<16x1024xbf16> to vector<16x256xbf16>
    %91 = vector.broadcast %49 : vector<16x1xbf16> to vector<16x256xbf16>
    %92 = arith.mulf %90, %91 : vector<16x256xbf16>
    %93 = vector.extract_strided_slice %89 {offsets = [0, 256], sizes = [16, 256], strides = [1, 1]} : vector<16x1024xbf16> to vector<16x256xbf16>
    %94 = vector.broadcast %54 : vector<16x1xbf16> to vector<16x256xbf16>
    %95 = arith.mulf %93, %94 : vector<16x256xbf16>
    %96 = arith.addf %92, %95 : vector<16x256xbf16>
    %97 = vector.extract_strided_slice %89 {offsets = [0, 512], sizes = [16, 256], strides = [1, 1]} : vector<16x1024xbf16> to vector<16x256xbf16>
    %98 = vector.broadcast %59 : vector<16x1xbf16> to vector<16x256xbf16>
    %99 = arith.mulf %97, %98 : vector<16x256xbf16>
    %100 = arith.addf %96, %99 : vector<16x256xbf16>
    %101 = vector.extract_strided_slice %89 {offsets = [0, 768], sizes = [16, 256], strides = [1, 1]} : vector<16x1024xbf16> to vector<16x256xbf16>
    %102 = vector.broadcast %64 : vector<16x1xbf16> to vector<16x256xbf16>
    %103 = arith.mulf %101, %102 : vector<16x256xbf16>
    %104 = arith.addf %100, %103 : vector<16x256xbf16>
    %105 = vector.extract_strided_slice %88 {offsets = [0, 1024], sizes = [16, 1024], strides = [1, 1]} : vector<16x2048xbf16> to vector<16x1024xbf16>
    %106 = vector.extract_strided_slice %105 {offsets = [0, 0], sizes = [16, 256], strides = [1, 1]} : vector<16x1024xbf16> to vector<16x256xbf16>
    %107 = vector.broadcast %49 : vector<16x1xbf16> to vector<16x256xbf16>
    %108 = arith.mulf %106, %107 : vector<16x256xbf16>
    %109 = vector.extract_strided_slice %105 {offsets = [0, 256], sizes = [16, 256], strides = [1, 1]} : vector<16x1024xbf16> to vector<16x256xbf16>
    %110 = vector.broadcast %54 : vector<16x1xbf16> to vector<16x256xbf16>
    %111 = arith.mulf %109, %110 : vector<16x256xbf16>
    %112 = arith.addf %108, %111 : vector<16x256xbf16>
    %113 = vector.extract_strided_slice %105 {offsets = [0, 512], sizes = [16, 256], strides = [1, 1]} : vector<16x1024xbf16> to vector<16x256xbf16>
    %114 = vector.broadcast %59 : vector<16x1xbf16> to vector<16x256xbf16>
    %115 = arith.mulf %113, %114 : vector<16x256xbf16>
    %116 = arith.addf %112, %115 : vector<16x256xbf16>
    %117 = vector.extract_strided_slice %105 {offsets = [0, 768], sizes = [16, 256], strides = [1, 1]} : vector<16x1024xbf16> to vector<16x256xbf16>
    %118 = vector.broadcast %64 : vector<16x1xbf16> to vector<16x256xbf16>
    %119 = arith.mulf %117, %118 : vector<16x256xbf16>
    %120 = arith.addf %116, %119 : vector<16x256xbf16>
    %c0_31 = arith.constant 0 : index
    %c0_32 = arith.constant 0 : index
    %121 = vector.load %arg6[%c0_31, %c0_32] : memref<256x256xbf16, #tpu.memory_space<vmem>>, vector<256x256xbf16>
    %cst_33 = arith.constant dense<0.000000e+00> : vector<16x256xf32>
    %122 = tpu.matmul %104, %121, %cst_33 {dimension_numbers = #tpu.dot_dimension_numbers<[1], [0], [0], [1], [0, 0, 1, 1], [], []>} : vector<16x256xbf16>, vector<256x256xbf16>, vector<16x256xf32> -> vector<16x256xf32>
    %c0_34 = arith.constant 0 : index
    %c2560 = arith.constant 2560 : index
    %123 = vector.load %arg10[%c0_34, %c2560] : memref<1x3200xf32, #tpu.memory_space<vmem>>, vector<1x256xf32>
    %124 = vector.broadcast %123 : vector<1x256xf32> to vector<16x256xf32>
    %125 = arith.addf %122, %124 : vector<16x256xf32>
    %cst_35 = arith.constant 0.000000e+00 : f32
    %126 = vector.broadcast %cst_35 : f32 to vector<16x256xf32>
    %127 = arith.maximumf %125, %126 : vector<16x256xf32>
    %128 = arith.truncf %127 : vector<16x256xf32> to vector<16x256xbf16>
    %129 = vector.extract_strided_slice %128 {offsets = [0, 0], sizes = [16, 64], strides = [1, 1]} : vector<16x256xbf16> to vector<16x64xbf16>
    %130 = vector.broadcast %49 : vector<16x1xbf16> to vector<16x64xbf16>
    %131 = arith.mulf %129, %130 : vector<16x64xbf16>
    %132 = vector.extract_strided_slice %128 {offsets = [0, 64], sizes = [16, 64], strides = [1, 1]} : vector<16x256xbf16> to vector<16x64xbf16>
    %133 = vector.broadcast %54 : vector<16x1xbf16> to vector<16x64xbf16>
    %134 = arith.mulf %132, %133 : vector<16x64xbf16>
    %135 = arith.addf %131, %134 : vector<16x64xbf16>
    %136 = vector.extract_strided_slice %128 {offsets = [0, 128], sizes = [16, 64], strides = [1, 1]} : vector<16x256xbf16> to vector<16x64xbf16>
    %137 = vector.broadcast %59 : vector<16x1xbf16> to vector<16x64xbf16>
    %138 = arith.mulf %136, %137 : vector<16x64xbf16>
    %139 = arith.addf %135, %138 : vector<16x64xbf16>
    %140 = vector.extract_strided_slice %128 {offsets = [0, 192], sizes = [16, 64], strides = [1, 1]} : vector<16x256xbf16> to vector<16x64xbf16>
    %141 = vector.broadcast %64 : vector<16x1xbf16> to vector<16x64xbf16>
    %142 = arith.mulf %140, %141 : vector<16x64xbf16>
    %143 = arith.addf %139, %142 : vector<16x64xbf16>
    %c0_36 = arith.constant 0 : index
    %c0_37 = arith.constant 0 : index
    %144 = vector.load %arg7[%c0_36, %c0_37] : memref<64x128xbf16, #tpu.memory_space<vmem>>, vector<64x128xbf16>
    %cst_38 = arith.constant dense<0.000000e+00> : vector<16x128xf32>
    %145 = tpu.matmul %143, %144, %cst_38 {dimension_numbers = #tpu.dot_dimension_numbers<[1], [0], [0], [1], [0, 0, 1, 1], [], []>} : vector<16x64xbf16>, vector<64x128xbf16>, vector<16x128xf32> -> vector<16x128xf32>
    %c0_39 = arith.constant 0 : index
    %c2816 = arith.constant 2816 : index
    %146 = vector.load %arg10[%c0_39, %c2816] : memref<1x3200xf32, #tpu.memory_space<vmem>>, vector<1x128xf32>
    %147 = vector.broadcast %146 : vector<1x128xf32> to vector<16x128xf32>
    %148 = arith.addf %145, %147 : vector<16x128xf32>
    %cst_40 = arith.constant 0.000000e+00 : f32
    %149 = vector.broadcast %cst_40 : f32 to vector<16x128xf32>
    %150 = arith.maximumf %148, %149 : vector<16x128xf32>
    %151 = arith.truncf %150 : vector<16x128xf32> to vector<16x128xbf16>
    %152 = vector.extract_strided_slice %151 {offsets = [0, 0], sizes = [16, 32], strides = [1, 1]} : vector<16x128xbf16> to vector<16x32xbf16>
    %153 = vector.broadcast %49 : vector<16x1xbf16> to vector<16x32xbf16>
    %154 = arith.mulf %152, %153 : vector<16x32xbf16>
    %155 = vector.extract_strided_slice %151 {offsets = [0, 32], sizes = [16, 32], strides = [1, 1]} : vector<16x128xbf16> to vector<16x32xbf16>
    %156 = vector.broadcast %54 : vector<16x1xbf16> to vector<16x32xbf16>
    %157 = arith.mulf %155, %156 : vector<16x32xbf16>
    %158 = arith.addf %154, %157 : vector<16x32xbf16>
    %159 = vector.extract_strided_slice %151 {offsets = [0, 64], sizes = [16, 32], strides = [1, 1]} : vector<16x128xbf16> to vector<16x32xbf16>
    %160 = vector.broadcast %59 : vector<16x1xbf16> to vector<16x32xbf16>
    %161 = arith.mulf %159, %160 : vector<16x32xbf16>
    %162 = arith.addf %158, %161 : vector<16x32xbf16>
    %163 = vector.extract_strided_slice %151 {offsets = [0, 96], sizes = [16, 32], strides = [1, 1]} : vector<16x128xbf16> to vector<16x32xbf16>
    %164 = vector.broadcast %64 : vector<16x1xbf16> to vector<16x32xbf16>
    %165 = arith.mulf %163, %164 : vector<16x32xbf16>
    %166 = arith.addf %162, %165 : vector<16x32xbf16>
    %c0_41 = arith.constant 0 : index
    %c0_42 = arith.constant 0 : index
    %167 = vector.load %arg8[%c0_41, %c0_42] : memref<32x128xbf16, #tpu.memory_space<vmem>>, vector<32x128xbf16>
    %cst_43 = arith.constant dense<0.000000e+00> : vector<16x128xf32>
    %168 = tpu.matmul %166, %167, %cst_43 {dimension_numbers = #tpu.dot_dimension_numbers<[1], [0], [0], [1], [0, 0, 1, 1], [], []>} : vector<16x32xbf16>, vector<32x128xbf16>, vector<16x128xf32> -> vector<16x128xf32>
    %c0_44 = arith.constant 0 : index
    %c2944 = arith.constant 2944 : index
    %169 = vector.load %arg10[%c0_44, %c2944] : memref<1x3200xf32, #tpu.memory_space<vmem>>, vector<1x128xf32>
    %170 = vector.broadcast %169 : vector<1x128xf32> to vector<16x128xf32>
    %171 = arith.addf %168, %170 : vector<16x128xf32>
    %172 = vector.extract_strided_slice %171 {offsets = [0, 0], sizes = [16, 32], strides = [1, 1]} : vector<16x128xf32> to vector<16x32xf32>
    %173 = vector.broadcast %68 : vector<16x1xf32> to vector<16x32xf32>
    %174 = arith.mulf %172, %173 : vector<16x32xf32>
    %175 = vector.extract_strided_slice %171 {offsets = [0, 32], sizes = [16, 32], strides = [1, 1]} : vector<16x128xf32> to vector<16x32xf32>
    %176 = vector.broadcast %72 : vector<16x1xf32> to vector<16x32xf32>
    %177 = arith.mulf %175, %176 : vector<16x32xf32>
    %178 = arith.addf %174, %177 : vector<16x32xf32>
    %179 = vector.extract_strided_slice %171 {offsets = [0, 64], sizes = [16, 32], strides = [1, 1]} : vector<16x128xf32> to vector<16x32xf32>
    %180 = vector.broadcast %76 : vector<16x1xf32> to vector<16x32xf32>
    %181 = arith.mulf %179, %180 : vector<16x32xf32>
    %182 = arith.addf %178, %181 : vector<16x32xf32>
    %183 = vector.extract_strided_slice %171 {offsets = [0, 96], sizes = [16, 32], strides = [1, 1]} : vector<16x128xf32> to vector<16x32xf32>
    %184 = vector.broadcast %80 : vector<16x1xf32> to vector<16x32xf32>
    %185 = arith.mulf %183, %184 : vector<16x32xf32>
    %186 = arith.addf %182, %185 : vector<16x32xf32>
    %c0_45 = arith.constant 0 : index
    %c0_46 = arith.constant 0 : index
    %187 = vector.load %arg9[%c0_45, %c0_46] : memref<256x128xbf16, #tpu.memory_space<vmem>>, vector<256x128xbf16>
    %cst_47 = arith.constant dense<0.000000e+00> : vector<16x128xf32>
    %188 = tpu.matmul %120, %187, %cst_47 {dimension_numbers = #tpu.dot_dimension_numbers<[1], [0], [0], [1], [0, 0, 1, 1], [], []>} : vector<16x256xbf16>, vector<256x128xbf16>, vector<16x128xf32> -> vector<16x128xf32>
    %c0_48 = arith.constant 0 : index
    %c3072 = arith.constant 3072 : index
    %189 = vector.load %arg10[%c0_48, %c3072] : memref<1x3200xf32, #tpu.memory_space<vmem>>, vector<1x128xf32>
    %190 = vector.broadcast %189 : vector<1x128xf32> to vector<16x128xf32>
    %191 = arith.addf %188, %190 : vector<16x128xf32>
    %192 = vector.extract_strided_slice %191 {offsets = [0, 0], sizes = [16, 32], strides = [1, 1]} : vector<16x128xf32> to vector<16x32xf32>
    %193 = vector.broadcast %68 : vector<16x1xf32> to vector<16x32xf32>
    %194 = arith.mulf %192, %193 : vector<16x32xf32>
    %195 = vector.extract_strided_slice %191 {offsets = [0, 32], sizes = [16, 32], strides = [1, 1]} : vector<16x128xf32> to vector<16x32xf32>
    %196 = vector.broadcast %72 : vector<16x1xf32> to vector<16x32xf32>
    %197 = arith.mulf %195, %196 : vector<16x32xf32>
    %198 = arith.addf %194, %197 : vector<16x32xf32>
    %199 = vector.extract_strided_slice %191 {offsets = [0, 64], sizes = [16, 32], strides = [1, 1]} : vector<16x128xf32> to vector<16x32xf32>
    %200 = vector.broadcast %76 : vector<16x1xf32> to vector<16x32xf32>
    %201 = arith.mulf %199, %200 : vector<16x32xf32>
    %202 = arith.addf %198, %201 : vector<16x32xf32>
    %203 = vector.extract_strided_slice %191 {offsets = [0, 96], sizes = [16, 32], strides = [1, 1]} : vector<16x128xf32> to vector<16x32xf32>
    %204 = vector.broadcast %80 : vector<16x1xf32> to vector<16x32xf32>
    %205 = arith.mulf %203, %204 : vector<16x32xf32>
    %206 = arith.addf %202, %205 : vector<16x32xf32>
    %cst_49 = arith.constant 0.000000e+00 : f32
    %207 = vector.broadcast %cst_49 : f32 to vector<16x28xf32>
    %208 = tpu.concatenate %37, %207 in 1 : vector<16x4xf32>, vector<16x28xf32> -> vector<16x32xf32>
    %209 = arith.extf %22 : vector<16x32xbf16> to vector<16x32xf32>
    %210 = tpu.concatenate %209, %208, %186, %206 in 1 : vector<16x32xf32>, vector<16x32xf32>, vector<16x32xf32>, vector<16x32xf32> -> vector<16x128xf32>
    %c0_50 = arith.constant 0 : index
    %c0_51 = arith.constant 0 : index
    %211 = vector.load %arg11[%c0_50, %c0_51] : memref<16x128xf32, #tpu.memory_space<vmem>>, vector<16x128xf32>
    tpu.vector_store %arg11[%c0_50, %c0_51], %210 {strides = array<i32>} : memref<16x128xf32, #tpu.memory_space<vmem>>, vector<16x128xf32>,
    return
  }
}

</mosaic_0001>

<llo_original>
// kernel: tpu_custom_call.1
$region0: #{tpu_custom_call.1}
  #allocation0 [shape = 'u32[]', space=smem, size = 0x4, offset = 0x4, fixed_abs, tag = 'smem constant byte address 0x4 - core index']
  #allocation1 [shape = 'u32[144,128]{1,0:T(1,128)}', space=vmem, size = 0x12000, scoped, tag = 'internal scratch']
  %s0 = inlined_call_operand.vmem [shape: bf16[16,256], index: 0, kind: input, shape index: {}]
  %s1 = inlined_call_operand.vmem [shape: bf16[256,32], index: 1, kind: input, shape index: {}]
  %s2 = inlined_call_operand.hbm [shape: bf16[32,32], index: 2, kind: input, shape index: {}]
  %s3 = inlined_call_operand.hbm [shape: bf16[32,32], index: 3, kind: input, shape index: {}]
  %s4 = inlined_call_operand.vmem [shape: bf16[32,4], index: 4, kind: input, shape index: {}]
  %s5 = inlined_call_operand.hbm [shape: bf16[32,2048], index: 5, kind: input, shape index: {}]
  %s6 = inlined_call_operand.hbm [shape: bf16[256,256], index: 6, kind: input, shape index: {}]
  %s7 = inlined_call_operand.vmem [shape: bf16[64,128], index: 7, kind: input, shape index: {}]
  %s8 = inlined_call_operand.hbm [shape: bf16[32,128], index: 8, kind: input, shape index: {}]
  %s9 = inlined_call_operand.vmem [shape: bf16[256,128], index: 9, kind: input, shape index: {}]
  %s10 = inlined_call_operand.vmem [shape: f32[1,3200], index: 10, kind: input, shape index: {}]
  %s11 = inlined_call_operand.hbm [shape: f32[16,128], index: 11, kind: output, shape index: {}]
  %s12 = sld [smem:[#allocation0]]
  $region74: #{tpu_custom_call.1} parent=0
    _
  %s14 = ssub.s32 1, %s12
  %s15 = scalar_select 0, %s14, %s12
  $region1: #{tpu_custom_call.1} parent=0
    #allocation2 [shape = 'u8[8192]{0}', space=vmem, size = 0x2000, scoped, tag = 'input window, operand 2, single buffered']
    #allocation3 [shape = 's32[1]{0}', space=sflag, size = 0x4, scoped, tag = 'scoped memory for tpu_custom_call.1']
    #allocation4 [shape = 's32[1]{0}', space=sflag, size = 0x4, scoped, tag = 'scoped memory for tpu_custom_call.1']
    #allocation5 [shape = 'u8[8192]{0}', space=vmem, size = 0x2000, scoped, tag = 'input window, operand 3, single buffered']
    #allocation6 [shape = 's32[1]{0}', space=sflag, size = 0x4, scoped, tag = 'scoped memory for tpu_custom_call.1']
    #allocation7 [shape = 'u8[131072]{0}', space=vmem, size = 0x20000, scoped, tag = 'input window, operand 5, single buffered']
    #allocation8 [shape = 'u8[131072]{0}', space=vmem, size = 0x20000, scoped, tag = 'input window, operand 6, single buffered']
    #allocation9 [shape = 's32[1]{0}', space=sflag, size = 0x4, scoped, tag = 'scoped memory for tpu_custom_call.1']
    #allocation10 [shape = 'u8[8192]{0}', space=vmem, size = 0x2000, scoped, tag = 'input window, operand 8, single buffered']
    #allocation11 [shape = 'u8[8192]{0}', space=vmem, size = 0x2000, scoped, tag = 'output window, operand 0, single buffered']
    %16 = vsyncpa [#allocation3], 0
    %17 = vsyncpa [#allocation6], 0
    %18 = vsyncpa [#allocation9], 0
    %19 = vsyncpa [#allocation4], 0
    // Predicated region
    $region2: #{tpu_custom_call.1} parent=1 // pred_check
      _
    $region3: #{tpu_custom_call.1} parent=1 // pred_check_branch
      %21 = sbr.rel (0) target = $region5
    $region4: #{tpu_custom_call.1} parent=1 // pred_region
      _
    $region5: #{tpu_custom_call.1} parent=1 // pred_fallthru
      _
    // Predicated region
    $region6: #{tpu_custom_call.1} parent=1 // pred_check
      _
    $region7: #{tpu_custom_call.1} parent=1 // pred_check_branch
      %23 = sbr.rel (0) target = $region9
    $region8: #{tpu_custom_call.1} parent=1 // pred_region
      _
    $region9: #{tpu_custom_call.1} parent=1 // pred_fallthru
      _
    // Predicated region
    $region10: #{tpu_custom_call.1} parent=1 // pred_check
      _
    $region11: #{tpu_custom_call.1} parent=1 // pred_check_branch
      %25 = sbr.rel (0) target = $region13
    $region12: #{tpu_custom_call.1} parent=1 // pred_region
      %s27 = ssub.s32 256, 256
      %28 = vsyncadd [#allocation3], %s27
      %s29 = sshll.u32 [#allocation2], 4
      %s30 = int_to_ptr.vmem [resolvable:$true] %s29
      %35 = dma.hbm_to_vmem [thread:$0]  %s2, 256, %s30, [#allocation3], 64, 64, 4
    $region13: #{tpu_custom_call.1} parent=1 // pred_fallthru
      _
    // Predicated region
    $region14: #{tpu_custom_call.1} parent=1 // pred_check
      _
    $region15: #{tpu_custom_call.1} parent=1 // pred_check_branch
      %37 = sbr.rel (0) target = $region17
    $region16: #{tpu_custom_call.1} parent=1 // pred_region
      %s39 = ssub.s32 256, 256
      %40 = vsyncadd [#allocation6], %s39
      %s41 = sshll.u32 [#allocation5], 4
      %s42 = int_to_ptr.vmem [resolvable:$true] %s41
      %47 = dma.hbm_to_vmem [thread:$0]  %s3, 256, %s42, [#allocation6], 64, 64, 4
    $region17: #{tpu_custom_call.1} parent=1 // pred_fallthru
      _
    // Predicated region
    $region18: #{tpu_custom_call.1} parent=1 // pred_check
      _
    $region19: #{tpu_custom_call.1} parent=1 // pred_check_branch
      %49 = sbr.rel (0) target = $region21
    $region20: #{tpu_custom_call.1} parent=1 // pred_region
      _
    $region21: #{tpu_custom_call.1} parent=1 // pred_fallthru
      _
    // Predicated region
    $region22: #{tpu_custom_call.1} parent=1 // pred_check
      _
    $region23: #{tpu_custom_call.1} parent=1 // pred_check_branch
      %51 = sbr.rel (0) target = $region25
    $region24: #{tpu_custom_call.1} parent=1 // pred_region
      %s53 = ssub.s32 4096, 4096
      %54 = vsyncadd [#allocation6], %s53
      %s55 = sshll.u32 [#allocation7], 4
      %s56 = int_to_ptr.vmem [resolvable:$true] %s55
      %61 = dma.hbm_to_vmem [thread:$0]  %s5, 4096, %s56, [#allocation6], 1024, 1024, 64
    $region25: #{tpu_custom_call.1} parent=1 // pred_fallthru
      _
    // Predicated region
    $region26: #{tpu_custom_call.1} parent=1 // pred_check
      _
    $region27: #{tpu_custom_call.1} parent=1 // pred_check_branch
      %63 = sbr.rel (0) target = $region29
    $region28: #{tpu_custom_call.1} parent=1 // pred_region
      %s65 = ssub.s32 4096, 4096
      %66 = vsyncadd [#allocation9], %s65
      %s67 = sshll.u32 [#allocation8], 4
      %s68 = int_to_ptr.vmem [resolvable:$true] %s67
      %73 = dma.hbm_to_vmem [thread:$0]  %s6, 4096, %s68, [#allocation9], 128, 128, 8
    $region29: #{tpu_custom_call.1} parent=1 // pred_fallthru
      _
    // Predicated region
    $region30: #{tpu_custom_call.1} parent=1 // pred_check
      _
    $region31: #{tpu_custom_call.1} parent=1 // pred_check_branch
      %75 = sbr.rel (0) target = $region33
    $region32: #{tpu_custom_call.1} parent=1 // pred_region
      _
    $region33: #{tpu_custom_call.1} parent=1 // pred_fallthru
      _
    // Predicated region
    $region34: #{tpu_custom_call.1} parent=1 // pred_check
      _
    $region35: #{tpu_custom_call.1} parent=1 // pred_check_branch
      %77 = sbr.rel (0) target = $region37
    $region36: #{tpu_custom_call.1} parent=1 // pred_region
      %s79 = ssub.s32 256, 256
      %80 = vsyncadd [#allocation9], %s79
      %s81 = sshll.u32 [#allocation10], 4
      %s82 = int_to_ptr.vmem [resolvable:$true] %s81
      %87 = dma.hbm_to_vmem [thread:$0]  %s8, 256, %s82, [#allocation9], 64, 64, 4
    $region37: #{tpu_custom_call.1} parent=1 // pred_fallthru
      _
    // Predicated region
    $region38: #{tpu_custom_call.1} parent=1 // pred_check
      _
    $region39: #{tpu_custom_call.1} parent=1 // pred_check_branch
      %89 = sbr.rel (0) target = $region41
    $region40: #{tpu_custom_call.1} parent=1 // pred_region
      _
    $region41: #{tpu_custom_call.1} parent=1 // pred_fallthru
      _
    // Predicated region
    $region42: #{tpu_custom_call.1} parent=1 // pred_check
      _
    $region43: #{tpu_custom_call.1} parent=1 // pred_check_branch
      %91 = sbr.rel (0) target = $region45
    $region44: #{tpu_custom_call.1} parent=1 // pred_region
      _
    $region45: #{tpu_custom_call.1} parent=1 // pred_fallthru
      _
    // Predicated region
    $region46: #{tpu_custom_call.1} parent=1 // pred_check
      _
    $region47: #{tpu_custom_call.1} parent=1 // pred_check_branch
      %93 = sbr.rel (0) target = $region49
    $region48: #{tpu_custom_call.1} parent=1 // pred_region
      %94 = dma.done [#allocation3], 256
    $region49: #{tpu_custom_call.1} parent=1 // pred_fallthru
      _
    // Predicated region
    $region50: #{tpu_custom_call.1} parent=1 // pred_check
      _
    $region51: #{tpu_custom_call.1} parent=1 // pred_check_branch
      %96 = sbr.rel (0) target = $region53
    $region52: #{tpu_custom_call.1} parent=1 // pred_region
      %97 = dma.done [#allocation6], 256
    $region53: #{tpu_custom_call.1} parent=1 // pred_fallthru
      _
    // Predicated region
    $region54: #{tpu_custom_call.1} parent=1 // pred_check
      _
    $region55: #{tpu_custom_call.1} parent=1 // pred_check_branch
      %99 = sbr.rel (0) target = $region57
    $region56: #{tpu_custom_call.1} parent=1 // pred_region
      %100 = dma.done [#allocation6], 4096
    $region57: #{tpu_custom_call.1} parent=1 // pred_fallthru
      _
    // Predicated region
    $region58: #{tpu_custom_call.1} parent=1 // pred_check
      _
    $region59: #{tpu_custom_call.1} parent=1 // pred_check_branch
      %102 = sbr.rel (0) target = $region61
    $region60: #{tpu_custom_call.1} parent=1 // pred_region
      %103 = dma.done [#allocation9], 4096
    $region61: #{tpu_custom_call.1} parent=1 // pred_fallthru
      _
    // Predicated region
    $region62: #{tpu_custom_call.1} parent=1 // pred_check
      _
    $region63: #{tpu_custom_call.1} parent=1 // pred_check_branch
      %105 = sbr.rel (0) target = $region65
    $region64: #{tpu_custom_call.1} parent=1 // pred_region
      %106 = dma.done [#allocation9], 256
    $region65: #{tpu_custom_call.1} parent=1 // pred_fallthru
      _
    %v108 = vld [vmem:[%s0] sm:$0xff]
    %v109 = vld [vmem:[%s0 + $0x8] sm:$0xff]
    %v110 = vld [vmem:[%s1] sm:$0xf]
    %v111 = vld [vmem:[%s1 + $0x4] sm:$0xf]
    %v112 = vld [vmem:[%s1 + $0x8] sm:$0xf]
    %v113 = vld [vmem:[%s1 + $0xc] sm:$0xf]
    %v114 = vld [vmem:[%s1 + $0x10] sm:$0xf]
    %v115 = vld [vmem:[%s1 + $0x14] sm:$0xf]
    %v116 = vld [vmem:[%s1 + $0x18] sm:$0xf]
    %v117 = vld [vmem:[%s1 + $0x1c] sm:$0xf]
    %v118 = vld [vmem:[%s1 + $0x20] sm:$0xf]
    %v119 = vld [vmem:[%s1 + $0x24] sm:$0xf]
    %v120 = vld [vmem:[%s1 + $0x28] sm:$0xf]
    %v121 = vld [vmem:[%s1 + $0x2c] sm:$0xf]
    %v122 = vld [vmem:[%s1 + $0x30] sm:$0xf]
    %v123 = vld [vmem:[%s1 + $0x34] sm:$0xf]
    %v124 = vld [vmem:[%s1 + $0x38] sm:$0xf]
    %v125 = vld [vmem:[%s1 + $0x3c] sm:$0xf]
    %v126 = vld [vmem:[%s1 + $0x40] sm:$0xf]
    %v127 = vld [vmem:[%s1 + $0x44] sm:$0xf]
    %v128 = vld [vmem:[%s1 + $0x48] sm:$0xf]
    %v129 = vld [vmem:[%s1 + $0x4c] sm:$0xf]
    %v130 = vld [vmem:[%s1 + $0x50] sm:$0xf]
    %v131 = vld [vmem:[%s1 + $0x54] sm:$0xf]
    %v132 = vld [vmem:[%s1 + $0x58] sm:$0xf]
    %v133 = vld [vmem:[%s1 + $0x5c] sm:$0xf]
    %v134 = vld [vmem:[%s1 + $0x60] sm:$0xf]
    %v135 = vld [vmem:[%s1 + $0x64] sm:$0xf]
    %v136 = vld [vmem:[%s1 + $0x68] sm:$0xf]
    %v137 = vld [vmem:[%s1 + $0x6c] sm:$0xf]
    %v138 = vld [vmem:[%s1 + $0x70] sm:$0xf]
    %v139 = vld [vmem:[%s1 + $0x74] sm:$0xf]
    %v140 = vld [vmem:[%s1 + $0x78] sm:$0xf]
    %v141 = vld [vmem:[%s1 + $0x7c] sm:$0xf]
    %v142 = vld [vmem:[%s10] sm:$0x1]
    %v144 = vlaneseq
    %v145 = vshrl.u32 %v144, 7
    %v146 = vsub.s32 0, %v145
    %v147 = vrot.slane %v142, %v146
    %v151 = vunpack.c.l.b16 %v108
    %v152 = vunpack.c.h.b16 %v108
    %v153 = vunpack.c.l.b16 %v109
    %v154 = vunpack.c.h.b16 %v109
    %v155 = vpack.c.b16 %v153, %v151
    %v156 = vpack.c.b16 %v154, %v152
    %v191 = vunpack.c.l.b16 %v110
    %v192 = vunpack.c.l.b16 %v111
    %v193 = vunpack.c.l.b16 %v112
    %v194 = vunpack.c.l.b16 %v113
    %v195 = vunpack.c.l.b16 %v114
    %v196 = vunpack.c.l.b16 %v115
    %v197 = vunpack.c.l.b16 %v116
    %v198 = vunpack.c.l.b16 %v117
    %v199 = vunpack.c.l.b16 %v118
    %v200 = vunpack.c.l.b16 %v119
    %v201 = vunpack.c.l.b16 %v120
    %v202 = vunpack.c.l.b16 %v121
    %v203 = vunpack.c.l.b16 %v122
    %v204 = vunpack.c.l.b16 %v123
    %v205 = vunpack.c.l.b16 %v124
    %v206 = vunpack.c.l.b16 %v125
    %v207 = vunpack.c.l.b16 %v126
    %v208 = vunpack.c.l.b16 %v127
    %v209 = vunpack.c.l.b16 %v128
    %v210 = vunpack.c.l.b16 %v129
    %v211 = vunpack.c.l.b16 %v130
    %v212 = vunpack.c.l.b16 %v131
    %v213 = vunpack.c.l.b16 %v132
    %v214 = vunpack.c.l.b16 %v133
    %v215 = vunpack.c.l.b16 %v134
    %v216 = vunpack.c.l.b16 %v135
    %v217 = vunpack.c.l.b16 %v136
    %v218 = vunpack.c.l.b16 %v137
    %v219 = vunpack.c.l.b16 %v138
    %v220 = vunpack.c.l.b16 %v139
    %v221 = vunpack.c.l.b16 %v140
    %v222 = vunpack.c.l.b16 %v141
    %v223 = vpack.c.b16 %v192, %v191
    %v224 = vpack.c.b16 %v194, %v193
    %v225 = vpack.c.b16 %v196, %v195
    %v226 = vpack.c.b16 %v198, %v197
    %v227 = vpack.c.b16 %v200, %v199
    %v228 = vpack.c.b16 %v202, %v201
    %v229 = vpack.c.b16 %v204, %v203
    %v230 = vpack.c.b16 %v206, %v205
    %v231 = vpack.c.b16 %v208, %v207
    %v232 = vpack.c.b16 %v210, %v209
    %v233 = vpack.c.b16 %v212, %v211
    %v234 = vpack.c.b16 %v214, %v213
    %v235 = vpack.c.b16 %v216, %v215
    %v236 = vpack.c.b16 %v218, %v217
    %v237 = vpack.c.b16 %v220, %v219
    %v238 = vpack.c.b16 %v222, %v221
    %255 = vmatprep.subr.bf16.mxu0 0
    %256 = vmatpush1.bf16.msra.mxu0 %v223
    %257 = vmatprep.subr.bf16.mxu0 0
    %258 = vmatpush1.bf16.msra.mxu0 %v224
    %259 = vmatprep.subr.bf16.mxu0 0
    %260 = vmatpush1.bf16.msra.mxu0 %v225
    %261 = vmatprep.subr.bf16.mxu0 0
    %262 = vmatpush1.bf16.msra.mxu0 %v226
    %263 = vmatprep.subr.bf16.mxu0 0
    %264 = vmatpush1.bf16.msra.mxu0 %v227
    %265 = vmatprep.subr.bf16.mxu0 0
    %266 = vmatpush1.bf16.msra.mxu0 %v228
    %267 = vmatprep.subr.bf16.mxu0 0
    %268 = vmatpush1.bf16.msra.mxu0 %v229
    %269 = vmatprep.subr.bf16.mxu0 0
    %270 = vmatpush1.bf16.msra.mxu0 %v230
    %271 = vmatprep.subr.bf16.mxu0 0
    %272 = vmatpush1.bf16.msra.mxu0 %v231
    %273 = vmatprep.subr.bf16.mxu0 0
    %274 = vmatpush1.bf16.msra.mxu0 %v232
    %275 = vmatprep.subr.bf16.mxu0 0
    %276 = vmatpush1.bf16.msra.mxu0 %v233
    %277 = vmatprep.subr.bf16.mxu0 0
    %278 = vmatpush1.bf16.msra.mxu0 %v234
    %279 = vmatprep.subr.bf16.mxu0 0
    %280 = vmatpush1.bf16.msra.mxu0 %v235
    %281 = vmatprep.subr.bf16.mxu0 0
    %282 = vmatpush1.bf16.msra.mxu0 %v236
    %283 = vmatprep.subr.bf16.mxu0 0
    %284 = vmatpush1.bf16.msra.mxu0 %v237
    %285 = vmatprep.subr.bf16.mxu0 0
    %286 = vmatpush1.bf16.msra.mxu0 %v238
    %287 = vmatprep.mubr.bf16.mxu0 %v156
    %288 = vmatmul.mubr.bf16.gmra.mrb[0].mxu0 %v155
    %v289 = vpop.f32.mrb[0].mxu0
    %v290 = vadd.f32 %v147, %v289
    %v291 = vpop.f32.mrb[0].mxu0
    %v292 = vpop.f32.mrb[0].mxu0
    %v293 = vadd.f32 %v147, %v292
    %v294 = vpop.f32.mrb[0].mxu0
    %295 = vdwg.mxu0
    %v296 = vpack.c.bf16 %v293, %v290
    %v297 = vld [vmem:[#allocation2] sm:$0xf]
    %v298 = vld [vmem:[#allocation2 + $0x4] sm:$0xf]
    %v299 = vld [vmem:[#allocation2 + $0x8] sm:$0xf]
    %v300 = vld [vmem:[#allocation2 + $0xc] sm:$0xf]
    %v301 = vld [vmem:[%s10 + $0x1] sm:$0x1]
    %v303 = vlaneseq
    %v304 = vshrl.u32 %v303, 7
    %v305 = vsub.s32 0, %v304
    %v306 = vrot.slane %v301, %v305
    %v312 = vunpack.c.l.b16 %v297
    %v313 = vunpack.c.l.b16 %v298
    %v314 = vunpack.c.l.b16 %v299
    %v315 = vunpack.c.l.b16 %v300
    %v316 = vpack.c.b16 %v313, %v312
    %v317 = vpack.c.b16 %v315, %v314
    %vm320 = vcmask 261120
    %v322 = vsel %vm320, %v296, 0
    %324 = vmatprep.subr.bf16.mxu0 0
    %325 = vmatpush1.bf16.msra.mxu0 %v316
    %326 = vmatprep.subr.bf16.mxu0 0
    %327 = vmatpush1.bf16.msra.mxu0 %v317
    %328 = vmatprep.subr.bf16.mxu0 0
    %329 = vmatpush1.bf16.msra.mxu0 0
    %330 = vmatprep.subr.bf16.mxu0 0
    %331 = vmatpush1.bf16.msra.mxu0 0
    %332 = vmatprep.subr.bf16.mxu0 0
    %333 = vmatpush1.bf16.msra.mxu0 0
    %334 = vmatprep.subr.bf16.mxu0 0
    %335 = vmatpush1.bf16.msra.mxu0 0
    %336 = vmatprep.subr.bf16.mxu0 0
    %337 = vmatpush1.bf16.msra.mxu0 0
    %338 = vmatprep.subr.bf16.mxu0 0
    %339 = vmatpush1.bf16.msra.mxu0 0
    %340 = vmatprep.subr.bf16.mxu0 0
    %341 = vmatpush1.bf16.msra.mxu0 0
    %342 = vmatprep.subr.bf16.mxu0 0
    %343 = vmatpush1.bf16.msra.mxu0 0
    %344 = vmatprep.subr.bf16.mxu0 0
    %345 = vmatpush1.bf16.msra.mxu0 0
    %346 = vmatprep.subr.bf16.mxu0 0
    %347 = vmatpush1.bf16.msra.mxu0 0
    %348 = vmatprep.subr.bf16.mxu0 0
    %349 = vmatpush1.bf16.msra.mxu0 0
    %350 = vmatprep.subr.bf16.mxu0 0
    %351 = vmatpush1.bf16.msra.mxu0 0
    %352 = vmatprep.subr.bf16.mxu0 0
    %353 = vmatpush1.bf16.msra.mxu0 0
    %354 = vmatprep.subr.bf16.mxu0 0
    %355 = vmatpush1.bf16.msra.mxu0 0
    %356 = vmatprep.mubr.bf16.mxu0 0
    %357 = vmatmul.mubr.bf16.gmra.mrb[0].mxu0 %v322
    %v358 = vpop.f32.mrb[0].mxu0
    %v359 = vadd.f32 %v306, %v358
    %v360 = vpop.f32.mrb[0].mxu0
    %v361 = vpop.f32.mrb[0].mxu0
    %v362 = vadd.f32 %v306, %v361
    %v363 = vpop.f32.mrb[0].mxu0
    %364 = vdwg.mxu0
    %v365 = vmax.f32 %v359, 0.0
    %v366 = vmax.f32 %v362, 0.0
    %v367 = vpack.c.bf16 %v366, %v365
    %v368 = vld [vmem:[#allocation5] sm:$0xf]
    %v369 = vld [vmem:[#allocation5 + $0x4] sm:$0xf]
    %v370 = vld [vmem:[#allocation5 + $0x8] sm:$0xf]
    %v371 = vld [vmem:[#allocation5 + $0xc] sm:$0xf]
    %v372 = vld [vmem:[%s10 + $0x2] sm:$0x1]
    %v374 = vlaneseq
    %v375 = vshrl.u32 %v374, 7
    %v376 = vsub.s32 0, %v375
    %v377 = vrot.slane %v372, %v376
    %v383 = vunpack.c.l.b16 %v368
    %v384 = vunpack.c.l.b16 %v369
    %v385 = vunpack.c.l.b16 %v370
    %v386 = vunpack.c.l.b16 %v371
    %v387 = vpack.c.b16 %v384, %v383
    %v388 = vpack.c.b16 %v386, %v385
    %v392 = vsel %vm320, %v367, 0
    %394 = vmatprep.subr.bf16.mxu0 0
    %395 = vmatpush1.bf16.msra.mxu0 %v387
    %396 = vmatprep.subr.bf16.mxu0 0
    %397 = vmatpush1.bf16.msra.mxu0 %v388
    %398 = vmatprep.subr.bf16.mxu0 0
    %399 = vmatpush1.bf16.msra.mxu0 0
    %400 = vmatprep.subr.bf16.mxu0 0
    %401 = vmatpush1.bf16.msra.mxu0 0
    %402 = vmatprep.subr.bf16.mxu0 0
    %403 = vmatpush1.bf16.msra.mxu0 0
    %404 = vmatprep.subr.bf16.mxu0 0
    %405 = vmatpush1.bf16.msra.mxu0 0
    %406 = vmatprep.subr.bf16.mxu0 0
    %407 = vmatpush1.bf16.msra.mxu0 0
    %408 = vmatprep.subr.bf16.mxu0 0
    %409 = vmatpush1.bf16.msra.mxu0 0
    %410 = vmatprep.subr.bf16.mxu0 0
    %411 = vmatpush1.bf16.msra.mxu0 0
    %412 = vmatprep.subr.bf16.mxu0 0
    %413 = vmatpush1.bf16.msra.mxu0 0
    %414 = vmatprep.subr.bf16.mxu0 0
    %415 = vmatpush1.bf16.msra.mxu0 0
    %416 = vmatprep.subr.bf16.mxu0 0
    %417 = vmatpush1.bf16.msra.mxu0 0
    %418 = vmatprep.subr.bf16.mxu0 0
    %419 = vmatpush1.bf16.msra.mxu0 0
    %420 = vmatprep.subr.bf16.mxu0 0
    %421 = vmatpush1.bf16.msra.mxu0 0
    %422 = vmatprep.subr.bf16.mxu0 0
    %423 = vmatpush1.bf16.msra.mxu0 0
    %424 = vmatprep.subr.bf16.mxu0 0
    %425 = vmatpush1.bf16.msra.mxu0 0
    %426 = vmatprep.mubr.bf16.mxu0 0
    %427 = vmatmul.mubr.bf16.gmra.mrb[0].mxu0 %v392
    %v428 = vpop.f32.mrb[0].mxu0
    %v429 = vadd.f32 %v377, %v428
    %v430 = vpop.f32.mrb[0].mxu0
    %v431 = vpop.f32.mrb[0].mxu0
    %v432 = vadd.f32 %v377, %v431
    %v433 = vpop.f32.mrb[0].mxu0
    %434 = vdwg.mxu0
    %v435 = vmax.f32 %v429, 0.0
    %v436 = vmax.f32 %v432, 0.0
    %v437 = vpack.c.bf16 %v436, %v435
    %v438 = vld [vmem:[%s4] sm:$0xf]
    %v439 = vld [vmem:[%s4 + $0x4] sm:$0xf]
    %v440 = vld [vmem:[%s4 + $0x8] sm:$0xf]
    %v441 = vld [vmem:[%s4 + $0xc] sm:$0xf]
    %v442 = vld [vmem:[%s10 + $0x3] sm:$0x1]
    %v444 = vlaneseq
    %v445 = vshrl.u32 %v444, 7
    %v446 = vsub.s32 0, %v445
    %v447 = vrot.slane %v442, %v446
    %v453 = vunpack.c.l.b16 %v438
    %v454 = vunpack.c.l.b16 %v439
    %v455 = vunpack.c.l.b16 %v440
    %v456 = vunpack.c.l.b16 %v441
    %v457 = vpack.c.b16 %v454, %v453
    %v458 = vpack.c.b16 %v456, %v455
    %v462 = vsel %vm320, %v437, 0
    %464 = vmatprep.subr.bf16.mxu0 0
    %465 = vmatpush1.bf16.msra.mxu0 %v457
    %466 = vmatprep.subr.bf16.mxu0 0
    %467 = vmatpush1.bf16.msra.mxu0 %v458
    %468 = vmatprep.subr.bf16.mxu0 0
    %469 = vmatpush1.bf16.msra.mxu0 0
    %470 = vmatprep.subr.bf16.mxu0 0
    %471 = vmatpush1.bf16.msra.mxu0 0
    %472 = vmatprep.subr.bf16.mxu0 0
    %473 = vmatpush1.bf16.msra.mxu0 0
    %474 = vmatprep.subr.bf16.mxu0 0
    %475 = vmatpush1.bf16.msra.mxu0 0
    %476 = vmatprep.subr.bf16.mxu0 0
    %477 = vmatpush1.bf16.msra.mxu0 0
    %478 = vmatprep.subr.bf16.mxu0 0
    %479 = vmatpush1.bf16.msra.mxu0 0
    %480 = vmatprep.subr.bf16.mxu0 0
    %481 = vmatpush1.bf16.msra.mxu0 0
    %482 = vmatprep.subr.bf16.mxu0 0
    %483 = vmatpush1.bf16.msra.mxu0 0
    %484 = vmatprep.subr.bf16.mxu0 0
    %485 = vmatpush1.bf16.msra.mxu0 0
    %486 = vmatprep.subr.bf16.mxu0 0
    %487 = vmatpush1.bf16.msra.mxu0 0
    %488 = vmatprep.subr.bf16.mxu0 0
    %489 = vmatpush1.bf16.msra.mxu0 0
    %490 = vmatprep.subr.bf16.mxu0 0
    %491 = vmatpush1.bf16.msra.mxu0 0
    %492 = vmatprep.subr.bf16.mxu0 0
    %493 = vmatpush1.bf16.msra.mxu0 0
    %494 = vmatprep.subr.bf16.mxu0 0
    %495 = vmatpush1.bf16.msra.mxu0 0
    %496 = vmatprep.mubr.bf16.mxu0 0
    %497 = vmatmul.mubr.bf16.gmra.mrb[0].mxu0 %v462
    %v498 = vpop.f32.mrb[0].mxu0
    %v499 = vadd.f32 %v447, %v498
    %v500 = vpop.f32.mrb[0].mxu0
    %v501 = vpop.f32.mrb[0].mxu0
    %v502 = vadd.f32 %v447, %v501
    %v503 = vpop.f32.mrb[0].mxu0
    %504 = vdwg.mxu0
    %vm505 = vcmask 31744
    %v506 = vsel %vm505, %v499, -inf
    %507 = vmax.xlane.f32.xlu0 %v506
    %v508 = vpop.xlane.xlu0 %507
    %v509 = vsel %vm505, %v502, -inf
    %510 = vmax.xlane.f32.xlu0 %v509
    %v511 = vpop.xlane.xlu0 %510
    %v512 = vsub.f32 %v499, %v508
    %v513 = vsub.f32 %v502, %v511
    %v514 = vmul.f32 %v512, 1.442695
    %v515 = vpow.pop %v514
    %v516 = vmul.f32 %v513, 1.442695
    %v517 = vpow.pop %v516
    %v518 = vsel %vm505, %v515, 0.0
    %519 = vadd.xlane.f32.xlu0 %v518
    %v520 = vpop.xlane.xlu0 %519
    %v521 = vsel %vm505, %v517, 0.0
    %522 = vadd.xlane.f32.xlu0 %v521
    %v523 = vpop.xlane.xlu0 %522
    %v524 = vrcp.pop %v520
    %v525 = vrcp.pop %v523
    %v526 = vmul.f32 %v515, %v524
    %v527 = vmul.f32 %v517, %v525
    %v528 = vlaneseq
    %v529 = vand.u32 %v528, 127
    %vm530 = vcmp.ge.f32.partialorder %v499, %v508
    %vm531 = vcmp.ge.f32.partialorder %v502, %v511
    %v532 = vsel %vm530, %v529, 4
    %v533 = vsel %vm531, %v529, 4
    %v534 = vsel %vm505, %v532, 2147483647
    %v535 = vand.u32 %v534, 65535
    %v536 = vshra.s32 %v534, 16
    %v537 = vcvt.s32.f32 %v535
    %v538 = vcvt.s32.f32 %v536
    %539 = vmin.xlane.f32.xlu0 %v538
    %v540 = vpop.xlane.xlu0 %539
    %vm541 = vcmp.eq.f32.partialorder %v538, %v540
    %v542 = vsel %vm541, %v537, inf
    %543 = vmin.xlane.f32.xlu0 %v542
    %v544 = vpop.xlane.xlu0 %543
    %v545 = vcvt.f32.s32 %v544
    %v546 = vcvt.f32.s32 %v540
    %v547 = vshll.u32 %v546, 16
    %v548 = vadd.s32 %v547, %v545
    %v549 = vsel %vm505, %v533, 2147483647
    %v550 = vand.u32 %v549, 65535
    %v551 = vshra.s32 %v549, 16
    %v552 = vcvt.s32.f32 %v550
    %v553 = vcvt.s32.f32 %v551
    %554 = vmin.xlane.f32.xlu0 %v553
    %v555 = vpop.xlane.xlu0 %554
    %vm556 = vcmp.eq.f32.partialorder %v553, %v555
    %v557 = vsel %vm556, %v552, inf
    %558 = vmin.xlane.f32.xlu0 %v557
    %v559 = vpop.xlane.xlu0 %558
    %v560 = vcvt.f32.s32 %v559
    %v561 = vcvt.f32.s32 %v555
    %v562 = vshll.u32 %v561, 16
    %v563 = vadd.s32 %v562, %v560
    %vm564 = vcmp.eq.s32.totalorder %v548, 0
    %vm565 = vcmp.eq.s32.totalorder %v563, 0
    %v566 = vsel %vm564, 1, 0
    %v567 = vsel %vm565, 1, 0
    %v568 = vcvt.s32.f32 %v566
    %v569 = vcvt.s32.f32 %v567
    %v570 = vpack.c.bf16 %v569, %v568
    %vm571 = vcmp.eq.s32.totalorder %v548, 1
    %vm572 = vcmp.eq.s32.totalorder %v563, 1
    %v573 = vsel %vm571, 1, 0
    %v574 = vsel %vm572, 1, 0
    %v575 = vcvt.s32.f32 %v573
    %v576 = vcvt.s32.f32 %v574
    %v577 = vpack.c.bf16 %v576, %v575
    %vm578 = vcmp.eq.s32.totalorder %v548, 2
    %vm579 = vcmp.eq.s32.totalorder %v563, 2
    %v580 = vsel %vm578, 1, 0
    %v581 = vsel %vm579, 1, 0
    %v582 = vcvt.s32.f32 %v580
    %v583 = vcvt.s32.f32 %v581
    %v584 = vpack.c.bf16 %v583, %v582
    %vm585 = vcmp.eq.s32.totalorder %v548, 3
    %vm586 = vcmp.eq.s32.totalorder %v563, 3
    %v587 = vsel %vm585, 1, 0
    %v588 = vsel %vm586, 1, 0
    %v589 = vcvt.s32.f32 %v587
    %v590 = vcvt.s32.f32 %v588
    %v591 = vpack.c.bf16 %v590, %v589
    %v592 = vld [vmem:[#allocation7] sm:$0xff]
    %v593 = vld [vmem:[#allocation7 + $0x8] sm:$0xff]
    %v594 = vld [vmem:[#allocation7 + $0x10] sm:$0xff]
    %v595 = vld [vmem:[#allocation7 + $0x18] sm:$0xff]
    %v596 = vld [vmem:[#allocation7 + $0x20] sm:$0xff]
    %v597 = vld [vmem:[#allocation7 + $0x28] sm:$0xff]
    %v598 = vld [vmem:[#allocation7 + $0x30] sm:$0xff]
    %v599 = vld [vmem:[#allocation7 + $0x38] sm:$0xff]
    %v600 = vld [vmem:[#allocation7 + $0x40] sm:$0xff]
    %v601 = vld [vmem:[#allocation7 + $0x48] sm:$0xff]
    %v602 = vld [vmem:[#allocation7 + $0x50] sm:$0xff]
    %v603 = vld [vmem:[#allocation7 + $0x58] sm:$0xff]
    %v604 = vld [vmem:[#allocation7 + $0x60] sm:$0xff]
    %v605 = vld [vmem:[#allocation7 + $0x68] sm:$0xff]
    %v606 = vld [vmem:[#allocation7 + $0x70] sm:$0xff]
    %v607 = vld [vmem:[#allocation7 + $0x78] sm:$0xff]
    %v608 = vld [vmem:[#allocation7 + $0x80] sm:$0xff]
    %v609 = vld [vmem:[#allocation7 + $0x88] sm:$0xff]
    %v610 = vld [vmem:[#allocation7 + $0x90] sm:$0xff]
    %v611 = vld [vmem:[#allocation7 + $0x98] sm:$0xff]
    %v612 = vld [vmem:[#allocation7 + $0xa0] sm:$0xff]
    %v613 = vld [vmem:[#allocation7 + $0xa8] sm:$0xff]
    %v614 = vld [vmem:[#allocation7 + $0xb0] sm:$0xff]
    %v615 = vld [vmem:[#allocation7 + $0xb8] sm:$0xff]
    %v616 = vld [vmem:[#allocation7 + $0xc0] sm:$0xff]
    %v617 = vld [vmem:[#allocation7 + $0xc8] sm:$0xff]
    %v618 = vld [vmem:[#allocation7 + $0xd0] sm:$0xff]
    %v619 = vld [vmem:[#allocation7 + $0xd8] sm:$0xff]
    %v620 = vld [vmem:[#allocation7 + $0xe0] sm:$0xff]
    %v621 = vld [vmem:[#allocation7 + $0xe8] sm:$0xff]
    %v622 = vld [vmem:[#allocation7 + $0xf0] sm:$0xff]
    %v623 = vld [vmem:[#allocation7 + $0xf8] sm:$0xff]
    %v624 = vld [vmem:[%s10 + $0x4] sm:$0xff]
    %v625 = vld [vmem:[%s10 + $0xc] sm:$0xff]
    %v628 = vlaneseq
    %v629 = vshrl.u32 %v628, 7
    %v630 = vsub.s32 0, %v629
    %v631 = vrot.slane %v624, %v630
    %v632 = vlaneseq
    %v633 = vshrl.u32 %v632, 7
    %v634 = vsub.s32 1, %v633
    %v635 = vrot.slane %v624, %v634
    %v636 = vlaneseq
    %v637 = vshrl.u32 %v636, 7
    %v638 = vsub.s32 2, %v637
    %v639 = vrot.slane %v624, %v638
    %v640 = vlaneseq
    %v641 = vshrl.u32 %v640, 7
    %v642 = vsub.s32 3, %v641
    %v643 = vrot.slane %v624, %v642
    %v644 = vlaneseq
    %v645 = vshrl.u32 %v644, 7
    %v646 = vsub.s32 4, %v645
    %v647 = vrot.slane %v624, %v646
    %v648 = vlaneseq
    %v649 = vshrl.u32 %v648, 7
    %v650 = vsub.s32 5, %v649
    %v651 = vrot.slane %v624, %v650
    %v652 = vlaneseq
    %v653 = vshrl.u32 %v652, 7
    %v654 = vsub.s32 6, %v653
    %v655 = vrot.slane %v624, %v654
    %v656 = vlaneseq
    %v657 = vshrl.u32 %v656, 7
    %v658 = vsub.s32 7, %v657
    %v659 = vrot.slane %v624, %v658
    %v660 = vlaneseq
    %v661 = vshrl.u32 %v660, 7
    %v662 = vsub.s32 0, %v661
    %v663 = vrot.slane %v625, %v662
    %v664 = vlaneseq
    %v665 = vshrl.u32 %v664, 7
    %v666 = vsub.s32 1, %v665
    %v667 = vrot.slane %v625, %v666
    %v668 = vlaneseq
    %v669 = vshrl.u32 %v668, 7
    %v670 = vsub.s32 2, %v669
    %v671 = vrot.slane %v625, %v670
    %v672 = vlaneseq
    %v673 = vshrl.u32 %v672, 7
    %v674 = vsub.s32 3, %v673
    %v675 = vrot.slane %v625, %v674
    %v676 = vlaneseq
    %v677 = vshrl.u32 %v676, 7
    %v678 = vsub.s32 4, %v677
    %v679 = vrot.slane %v625, %v678
    %v680 = vlaneseq
    %v681 = vshrl.u32 %v680, 7
    %v682 = vsub.s32 5, %v681
    %v683 = vrot.slane %v625, %v682
    %v684 = vlaneseq
    %v685 = vshrl.u32 %v684, 7
    %v686 = vsub.s32 6, %v685
    %v687 = vrot.slane %v625, %v686
    %v688 = vlaneseq
    %v689 = vshrl.u32 %v688, 7
    %v690 = vsub.s32 7, %v689
    %v691 = vrot.slane %v625, %v690
    %v740 = vunpack.c.l.b16 %v592
    %v741 = vunpack.c.h.b16 %v592
    %v742 = vunpack.c.l.b16 %v593
    %v743 = vunpack.c.h.b16 %v593
    %v744 = vunpack.c.l.b16 %v594
    %v745 = vunpack.c.h.b16 %v594
    %v746 = vunpack.c.l.b16 %v595
    %v747 = vunpack.c.h.b16 %v595
    %v748 = vunpack.c.l.b16 %v596
    %v749 = vunpack.c.h.b16 %v596
    %v750 = vunpack.c.l.b16 %v597
    %v751 = vunpack.c.h.b16 %v597
    %v752 = vunpack.c.l.b16 %v598
    %v753 = vunpack.c.h.b16 %v598
    %v754 = vunpack.c.l.b16 %v599
    %v755 = vunpack.c.h.b16 %v599
    %v756 = vunpack.c.l.b16 %v600
    %v757 = vunpack.c.h.b16 %v600
    %v758 = vunpack.c.l.b16 %v601
    %v759 = vunpack.c.h.b16 %v601
    %v760 = vunpack.c.l.b16 %v602
    %v761 = vunpack.c.h.b16 %v602
    %v762 = vunpack.c.l.b16 %v603
    %v763 = vunpack.c.h.b16 %v603
    %v764 = vunpack.c.l.b16 %v604
    %v765 = vunpack.c.h.b16 %v604
    %v766 = vunpack.c.l.b16 %v605
    %v767 = vunpack.c.h.b16 %v605
    %v768 = vunpack.c.l.b16 %v606
    %v769 = vunpack.c.h.b16 %v606
    %v770 = vunpack.c.l.b16 %v607
    %v771 = vunpack.c.h.b16 %v607
    %v772 = vunpack.c.l.b16 %v608
    %v773 = vunpack.c.h.b16 %v608
    %v774 = vunpack.c.l.b16 %v609
    %v775 = vunpack.c.h.b16 %v609
    %v776 = vunpack.c.l.b16 %v610
    %v777 = vunpack.c.h.b16 %v610
    %v778 = vunpack.c.l.b16 %v611
    %v779 = vunpack.c.h.b16 %v611
    %v780 = vunpack.c.l.b16 %v612
    %v781 = vunpack.c.h.b16 %v612
    %v782 = vunpack.c.l.b16 %v613
    %v783 = vunpack.c.h.b16 %v613
    %v784 = vunpack.c.l.b16 %v614
    %v785 = vunpack.c.h.b16 %v614
    %v786 = vunpack.c.l.b16 %v615
    %v787 = vunpack.c.h.b16 %v615
    %v788 = vunpack.c.l.b16 %v616
    %v789 = vunpack.c.h.b16 %v616
    %v790 = vunpack.c.l.b16 %v617
    %v791 = vunpack.c.h.b16 %v617
    %v792 = vunpack.c.l.b16 %v618
    %v793 = vunpack.c.h.b16 %v618
    %v794 = vunpack.c.l.b16 %v619
    %v795 = vunpack.c.h.b16 %v619
    %v796 = vunpack.c.l.b16 %v620
    %v797 = vunpack.c.h.b16 %v620
    %v798 = vunpack.c.l.b16 %v621
    %v799 = vunpack.c.h.b16 %v621
    %v800 = vunpack.c.l.b16 %v622
    %v801 = vunpack.c.h.b16 %v622
    %v802 = vunpack.c.l.b16 %v623
    %v803 = vunpack.c.h.b16 %v623
    %v804 = vpack.c.b16 %v756, %v740
    %v805 = vpack.c.b16 %v757, %v741
    %v806 = vpack.c.b16 %v758, %v742
    %v807 = vpack.c.b16 %v759, %v743
    %v808 = vpack.c.b16 %v760, %v744
    %v809 = vpack.c.b16 %v761, %v745
    %v810 = vpack.c.b16 %v762, %v746
    %v811 = vpack.c.b16 %v763, %v747
    %v812 = vpack.c.b16 %v764, %v748
    %v813 = vpack.c.b16 %v765, %v749
    %v814 = vpack.c.b16 %v766, %v750
    %v815 = vpack.c.b16 %v767, %v751
    %v816 = vpack.c.b16 %v768, %v752
    %v817 = vpack.c.b16 %v769, %v753
    %v818 = vpack.c.b16 %v770, %v754
    %v819 = vpack.c.b16 %v771, %v755
    %v820 = vpack.c.b16 %v788, %v772
    %v821 = vpack.c.b16 %v789, %v773
    %v822 = vpack.c.b16 %v790, %v774
    %v823 = vpack.c.b16 %v791, %v775
    %v824 = vpack.c.b16 %v792, %v776
    %v825 = vpack.c.b16 %v793, %v777
    %v826 = vpack.c.b16 %v794, %v778
    %v827 = vpack.c.b16 %v795, %v779
    %v828 = vpack.c.b16 %v796, %v780
    %v829 = vpack.c.b16 %v797, %v781
    %v830 = vpack.c.b16 %v798, %v782
    %v831 = vpack.c.b16 %v799, %v783
    %v832 = vpack.c.b16 %v800, %v784
    %v833 = vpack.c.b16 %v801, %v785
    %v834 = vpack.c.b16 %v802, %v786
    %v835 = vpack.c.b16 %v803, %v787
    %868 = vmatprep.subr.bf16.mxu0 %v805
    %869 = vmatpush1.bf16.msra.mxu0 %v804
    %870 = vmatprep.subr.bf16.mxu0 %v821
    %871 = vmatpush1.bf16.msra.mxu0 %v820
    %872 = vmatprep.subr.bf16.mxu0 0
    %873 = vmatpush1.bf16.msra.mxu0 0
    %874 = vmatprep.subr.bf16.mxu0 0
    %875 = vmatpush1.bf16.msra.mxu0 0
    %876 = vmatprep.subr.bf16.mxu0 0
    %877 = vmatpush1.bf16.msra.mxu0 0
    %878 = vmatprep.subr.bf16.mxu0 0
    %879 = vmatpush1.bf16.msra.mxu0 0
    %880 = vmatprep.subr.bf16.mxu0 0
    %881 = vmatpush1.bf16.msra.mxu0 0
    %882 = vmatprep.subr.bf16.mxu0 0
    %883 = vmatpush1.bf16.msra.mxu0 0
    %884 = vmatprep.subr.bf16.mxu0 0
    %885 = vmatpush1.bf16.msra.mxu0 0
    %886 = vmatprep.subr.bf16.mxu0 0
    %887 = vmatpush1.bf16.msra.mxu0 0
    %888 = vmatprep.subr.bf16.mxu0 0
    %889 = vmatpush1.bf16.msra.mxu0 0
    %890 = vmatprep.subr.bf16.mxu0 0
    %891 = vmatpush1.bf16.msra.mxu0 0
    %892 = vmatprep.subr.bf16.mxu0 0
    %893 = vmatpush1.bf16.msra.mxu0 0
    %894 = vmatprep.subr.bf16.mxu0 0
    %895 = vmatpush1.bf16.msra.mxu0 0
    %896 = vmatprep.subr.bf16.mxu0 0
    %897 = vmatpush1.bf16.msra.mxu0 0
    %898 = vmatprep.subr.bf16.mxu0 0
    %899 = vmatpush1.bf16.msra.mxu0 0
    %900 = vmatprep.mubr.bf16.mxu0 0
    %901 = vmatmul.mubr.bf16.gmra.mrb[0].mxu0 %v462
    %v902 = vpop.f32.mrb[0].mxu0
    %v903 = vadd.f32 %v631, %v902
    %v904 = vpop.f32.mrb[0].mxu0
    %v905 = vadd.f32 %v635, %v904
    %v906 = vpop.f32.mrb[0].mxu0
    %v907 = vadd.f32 %v631, %v906
    %v908 = vpop.f32.mrb[0].mxu0
    %v909 = vadd.f32 %v635, %v908
    %910 = vdwg.mxu0
    %911 = vmatprep.subr.bf16.mxu0 %v807
    %912 = vmatpush1.bf16.msra.mxu0 %v806
    %913 = vmatprep.subr.bf16.mxu0 %v823
    %914 = vmatpush1.bf16.msra.mxu0 %v822
    %915 = vmatprep.subr.bf16.mxu0 0
    %916 = vmatpush1.bf16.msra.mxu0 0
    %917 = vmatprep.subr.bf16.mxu0 0
    %918 = vmatpush1.bf16.msra.mxu0 0
    %919 = vmatprep.subr.bf16.mxu0 0
    %920 = vmatpush1.bf16.msra.mxu0 0
    %921 = vmatprep.subr.bf16.mxu0 0
    %922 = vmatpush1.bf16.msra.mxu0 0
    %923 = vmatprep.subr.bf16.mxu0 0
    %924 = vmatpush1.bf16.msra.mxu0 0
    %925 = vmatprep.subr.bf16.mxu0 0
    %926 = vmatpush1.bf16.msra.mxu0 0
    %927 = vmatprep.subr.bf16.mxu0 0
    %928 = vmatpush1.bf16.msra.mxu0 0
    %929 = vmatprep.subr.bf16.mxu0 0
    %930 = vmatpush1.bf16.msra.mxu0 0
    %931 = vmatprep.subr.bf16.mxu0 0
    %932 = vmatpush1.bf16.msra.mxu0 0
    %933 = vmatprep.subr.bf16.mxu0 0
    %934 = vmatpush1.bf16.msra.mxu0 0
    %935 = vmatprep.subr.bf16.mxu0 0
    %936 = vmatpush1.bf16.msra.mxu0 0
    %937 = vmatprep.subr.bf16.mxu0 0
    %938 = vmatpush1.bf16.msra.mxu0 0
    %939 = vmatprep.subr.bf16.mxu0 0
    %940 = vmatpush1.bf16.msra.mxu0 0
    %941 = vmatprep.subr.bf16.mxu0 0
    %942 = vmatpush1.bf16.msra.mxu0 0
    %943 = vmatprep.mubr.bf16.mxu0 0
    %944 = vmatmul.mubr.bf16.gmra.mrb[0].mxu0 %v462
    %v945 = vpop.f32.mrb[0].mxu0
    %v946 = vadd.f32 %v639, %v945
    %v947 = vpop.f32.mrb[0].mxu0
    %v948 = vadd.f32 %v643, %v947
    %v949 = vpop.f32.mrb[0].mxu0
    %v950 = vadd.f32 %v639, %v949
    %v951 = vpop.f32.mrb[0].mxu0
    %v952 = vadd.f32 %v643, %v951
    %953 = vdwg.mxu0
    %954 = vmatprep.subr.bf16.mxu0 %v809
    %955 = vmatpush1.bf16.msra.mxu0 %v808
    %956 = vmatprep.subr.bf16.mxu0 %v825
    %957 = vmatpush1.bf16.msra.mxu0 %v824
    %958 = vmatprep.subr.bf16.mxu0 0
    %959 = vmatpush1.bf16.msra.mxu0 0
    %960 = vmatprep.subr.bf16.mxu0 0
    %961 = vmatpush1.bf16.msra.mxu0 0
    %962 = vmatprep.subr.bf16.mxu0 0
    %963 = vmatpush1.bf16.msra.mxu0 0
    %964 = vmatprep.subr.bf16.mxu0 0
    %965 = vmatpush1.bf16.msra.mxu0 0
    %966 = vmatprep.subr.bf16.mxu0 0
    %967 = vmatpush1.bf16.msra.mxu0 0
    %968 = vmatprep.subr.bf16.mxu0 0
    %969 = vmatpush1.bf16.msra.mxu0 0
    %970 = vmatprep.subr.bf16.mxu0 0
    %971 = vmatpush1.bf16.msra.mxu0 0
    %972 = vmatprep.subr.bf16.mxu0 0
    %973 = vmatpush1.bf16.msra.mxu0 0
    %974 = vmatprep.subr.bf16.mxu0 0
    %975 = vmatpush1.bf16.msra.mxu0 0
    %976 = vmatprep.subr.bf16.mxu0 0
    %977 = vmatpush1.bf16.msra.mxu0 0
    %978 = vmatprep.subr.bf16.mxu0 0
    %979 = vmatpush1.bf16.msra.mxu0 0
    %980 = vmatprep.subr.bf16.mxu0 0
    %981 = vmatpush1.bf16.msra.mxu0 0
    %982 = vmatprep.subr.bf16.mxu0 0
    %983 = vmatpush1.bf16.msra.mxu0 0
    %984 = vmatprep.subr.bf16.mxu0 0
    %985 = vmatpush1.bf16.msra.mxu0 0
    %986 = vmatprep.mubr.bf16.mxu0 0
    %987 = vmatmul.mubr.bf16.gmra.mrb[0].mxu0 %v462
    %v988 = vpop.f32.mrb[0].mxu0
    %v989 = vadd.f32 %v647, %v988
    %v990 = vpop.f32.mrb[0].mxu0
    %v991 = vadd.f32 %v651, %v990
    %v992 = vpop.f32.mrb[0].mxu0
    %v993 = vadd.f32 %v647, %v992
    %v994 = vpop.f32.mrb[0].mxu0
    %v995 = vadd.f32 %v651, %v994
    %996 = vdwg.mxu0
    %997 = vmatprep.subr.bf16.mxu0 %v811
    %998 = vmatpush1.bf16.msra.mxu0 %v810
    %999 = vmatprep.subr.bf16.mxu0 %v827
    %1000 = vmatpush1.bf16.msra.mxu0 %v826
    %1001 = vmatprep.subr.bf16.mxu0 0
    %1002 = vmatpush1.bf16.msra.mxu0 0
    %1003 = vmatprep.subr.bf16.mxu0 0
    %1004 = vmatpush1.bf16.msra.mxu0 0
    %1005 = vmatprep.subr.bf16.mxu0 0
    %1006 = vmatpush1.bf16.msra.mxu0 0
    %1007 = vmatprep.subr.bf16.mxu0 0
    %1008 = vmatpush1.bf16.msra.mxu0 0
    %1009 = vmatprep.subr.bf16.mxu0 0
    %1010 = vmatpush1.bf16.msra.mxu0 0
    %1011 = vmatprep.subr.bf16.mxu0 0
    %1012 = vmatpush1.bf16.msra.mxu0 0
    %1013 = vmatprep.subr.bf16.mxu0 0
    %1014 = vmatpush1.bf16.msra.mxu0 0
    %1015 = vmatprep.subr.bf16.mxu0 0
    %1016 = vmatpush1.bf16.msra.mxu0 0
    %1017 = vmatprep.subr.bf16.mxu0 0
    %1018 = vmatpush1.bf16.msra.mxu0 0
    %1019 = vmatprep.subr.bf16.mxu0 0
    %1020 = vmatpush1.bf16.msra.mxu0 0
    %1021 = vmatprep.subr.bf16.mxu0 0
    %1022 = vmatpush1.bf16.msra.mxu0 0
    %1023 = vmatprep.subr.bf16.mxu0 0
    %1024 = vmatpush1.bf16.msra.mxu0 0
    %1025 = vmatprep.subr.bf16.mxu0 0
    %1026 = vmatpush1.bf16.msra.mxu0 0
    %1027 = vmatprep.subr.bf16.mxu0 0
    %1028 = vmatpush1.bf16.msra.mxu0 0
    %1029 = vmatprep.mubr.bf16.mxu0 0
    %1030 = vmatmul.mubr.bf16.gmra.mrb[0].mxu0 %v462
    %v1031 = vpop.f32.mrb[0].mxu0
    %v1032 = vadd.f32 %v655, %v1031
    %v1033 = vpop.f32.mrb[0].mxu0
    %v1034 = vadd.f32 %v659, %v1033
    %v1035 = vpop.f32.mrb[0].mxu0
    %v1036 = vadd.f32 %v655, %v1035
    %v1037 = vpop.f32.mrb[0].mxu0
    %v1038 = vadd.f32 %v659, %v1037
    %1039 = vdwg.mxu0
    %1040 = vmatprep.subr.bf16.mxu0 %v813
    %1041 = vmatpush1.bf16.msra.mxu0 %v812
    %1042 = vmatprep.subr.bf16.mxu0 %v829
    %1043 = vmatpush1.bf16.msra.mxu0 %v828
    %1044 = vmatprep.subr.bf16.mxu0 0
    %1045 = vmatpush1.bf16.msra.mxu0 0
    %1046 = vmatprep.subr.bf16.mxu0 0
    %1047 = vmatpush1.bf16.msra.mxu0 0
    %1048 = vmatprep.subr.bf16.mxu0 0
    %1049 = vmatpush1.bf16.msra.mxu0 0
    %1050 = vmatprep.subr.bf16.mxu0 0
    %1051 = vmatpush1.bf16.msra.mxu0 0
    %1052 = vmatprep.subr.bf16.mxu0 0
    %1053 = vmatpush1.bf16.msra.mxu0 0
    %1054 = vmatprep.subr.bf16.mxu0 0
    %1055 = vmatpush1.bf16.msra.mxu0 0
    %1056 = vmatprep.subr.bf16.mxu0 0
    %1057 = vmatpush1.bf16.msra.mxu0 0
    %1058 = vmatprep.subr.bf16.mxu0 0
    %1059 = vmatpush1.bf16.msra.mxu0 0
    %1060 = vmatprep.subr.bf16.mxu0 0
    %1061 = vmatpush1.bf16.msra.mxu0 0
    %1062 = vmatprep.subr.bf16.mxu0 0
    %1063 = vmatpush1.bf16.msra.mxu0 0
    %1064 = vmatprep.subr.bf16.mxu0 0
    %1065 = vmatpush1.bf16.msra.mxu0 0
    %1066 = vmatprep.subr.bf16.mxu0 0
    %1067 = vmatpush1.bf16.msra.mxu0 0
    %1068 = vmatprep.subr.bf16.mxu0 0
    %1069 = vmatpush1.bf16.msra.mxu0 0
    %1070 = vmatprep.subr.bf16.mxu0 0
    %1071 = vmatpush1.bf16.msra.mxu0 0
    %1072 = vmatprep.mubr.bf16.mxu0 0
    %1073 = vmatmul.mubr.bf16.gmra.mrb[0].mxu0 %v462
    %v1074 = vpop.f32.mrb[0].mxu0
    %v1075 = vadd.f32 %v663, %v1074
    %v1076 = vpop.f32.mrb[0].mxu0
    %v1077 = vadd.f32 %v667, %v1076
    %v1078 = vpop.f32.mrb[0].mxu0
    %v1079 = vadd.f32 %v663, %v1078
    %v1080 = vpop.f32.mrb[0].mxu0
    %v1081 = vadd.f32 %v667, %v1080
    %1082 = vdwg.mxu0
    %1083 = vmatprep.subr.bf16.mxu0 %v815
    %1084 = vmatpush1.bf16.msra.mxu0 %v814
    %1085 = vmatprep.subr.bf16.mxu0 %v831
    %1086 = vmatpush1.bf16.msra.mxu0 %v830
    %1087 = vmatprep.subr.bf16.mxu0 0
    %1088 = vmatpush1.bf16.msra.mxu0 0
    %1089 = vmatprep.subr.bf16.mxu0 0
    %1090 = vmatpush1.bf16.msra.mxu0 0
    %1091 = vmatprep.subr.bf16.mxu0 0
    %1092 = vmatpush1.bf16.msra.mxu0 0
    %1093 = vmatprep.subr.bf16.mxu0 0
    %1094 = vmatpush1.bf16.msra.mxu0 0
    %1095 = vmatprep.subr.bf16.mxu0 0
    %1096 = vmatpush1.bf16.msra.mxu0 0
    %1097 = vmatprep.subr.bf16.mxu0 0
    %1098 = vmatpush1.bf16.msra.mxu0 0
    %1099 = vmatprep.subr.bf16.mxu0 0
    %1100 = vmatpush1.bf16.msra.mxu0 0
    %1101 = vmatprep.subr.bf16.mxu0 0
    %1102 = vmatpush1.bf16.msra.mxu0 0
    %1103 = vmatprep.subr.bf16.mxu0 0
    %1104 = vmatpush1.bf16.msra.mxu0 0
    %1105 = vmatprep.subr.bf16.mxu0 0
    %1106 = vmatpush1.bf16.msra.mxu0 0
    %1107 = vmatprep.subr.bf16.mxu0 0
    %1108 = vmatpush1.bf16.msra.mxu0 0
    %1109 = vmatprep.subr.bf16.mxu0 0
    %1110 = vmatpush1.bf16.msra.mxu0 0
    %1111 = vmatprep.subr.bf16.mxu0 0
    %1112 = vmatpush1.bf16.msra.mxu0 0
    %1113 = vmatprep.subr.bf16.mxu0 0
    %1114 = vmatpush1.bf16.msra.mxu0 0
    %1115 = vmatprep.mubr.bf16.mxu0 0
    %1116 = vmatmul.mubr.bf16.gmra.mrb[0].mxu0 %v462
    %v1117 = vpop.f32.mrb[0].mxu0
    %v1118 = vadd.f32 %v671, %v1117
    %v1119 = vpop.f32.mrb[0].mxu0
    %v1120 = vadd.f32 %v675, %v1119
    %v1121 = vpop.f32.mrb[0].mxu0
    %v1122 = vadd.f32 %v671, %v1121
    %v1123 = vpop.f32.mrb[0].mxu0
    %v1124 = vadd.f32 %v675, %v1123
    %1125 = vdwg.mxu0
    %1126 = vmatprep.subr.bf16.mxu0 %v817
    %1127 = vmatpush1.bf16.msra.mxu0 %v816
    %1128 = vmatprep.subr.bf16.mxu0 %v833
    %1129 = vmatpush1.bf16.msra.mxu0 %v832
    %1130 = vmatprep.subr.bf16.mxu0 0
    %1131 = vmatpush1.bf16.msra.mxu0 0
    %1132 = vmatprep.subr.bf16.mxu0 0
    %1133 = vmatpush1.bf16.msra.mxu0 0
    %1134 = vmatprep.subr.bf16.mxu0 0
    %1135 = vmatpush1.bf16.msra.mxu0 0
    %1136 = vmatprep.subr.bf16.mxu0 0
    %1137 = vmatpush1.bf16.msra.mxu0 0
    %1138 = vmatprep.subr.bf16.mxu0 0
    %1139 = vmatpush1.bf16.msra.mxu0 0
    %1140 = vmatprep.subr.bf16.mxu0 0
    %1141 = vmatpush1.bf16.msra.mxu0 0
    %1142 = vmatprep.subr.bf16.mxu0 0
    %1143 = vmatpush1.bf16.msra.mxu0 0
    %1144 = vmatprep.subr.bf16.mxu0 0
    %1145 = vmatpush1.bf16.msra.mxu0 0
    %1146 = vmatprep.subr.bf16.mxu0 0
    %1147 = vmatpush1.bf16.msra.mxu0 0
    %1148 = vmatprep.subr.bf16.mxu0 0
    %1149 = vmatpush1.bf16.msra.mxu0 0
    %1150 = vmatprep.subr.bf16.mxu0 0
    %1151 = vmatpush1.bf16.msra.mxu0 0
    %1152 = vmatprep.subr.bf16.mxu0 0
    %1153 = vmatpush1.bf16.msra.mxu0 0
    %1154 = vmatprep.subr.bf16.mxu0 0
    %1155 = vmatpush1.bf16.msra.mxu0 0
    %1156 = vmatprep.subr.bf16.mxu0 0
    %1157 = vmatpush1.bf16.msra.mxu0 0
    %1158 = vmatprep.mubr.bf16.mxu0 0
    %1159 = vmatmul.mubr.bf16.gmra.mrb[0].mxu0 %v462
    %v1160 = vpop.f32.mrb[0].mxu0
    %v1161 = vadd.f32 %v679, %v1160
    %v1162 = vpop.f32.mrb[0].mxu0
    %v1163 = vadd.f32 %v683, %v1162
    %v1164 = vpop.f32.mrb[0].mxu0
    %v1165 = vadd.f32 %v679, %v1164
    %v1166 = vpop.f32.mrb[0].mxu0
    %v1167 = vadd.f32 %v683, %v1166
    %1168 = vdwg.mxu0
    %1169 = vmatprep.subr.bf16.mxu0 %v819
    %1170 = vmatpush1.bf16.msra.mxu0 %v818
    %1171 = vmatprep.subr.bf16.mxu0 %v835
    %1172 = vmatpush1.bf16.msra.mxu0 %v834
    %1173 = vmatprep.subr.bf16.mxu0 0
    %1174 = vmatpush1.bf16.msra.mxu0 0
    %1175 = vmatprep.subr.bf16.mxu0 0
    %1176 = vmatpush1.bf16.msra.mxu0 0
    %1177 = vmatprep.subr.bf16.mxu0 0
    %1178 = vmatpush1.bf16.msra.mxu0 0
    %1179 = vmatprep.subr.bf16.mxu0 0
    %1180 = vmatpush1.bf16.msra.mxu0 0
    %1181 = vmatprep.subr.bf16.mxu0 0
    %1182 = vmatpush1.bf16.msra.mxu0 0
    %1183 = vmatprep.subr.bf16.mxu0 0
    %1184 = vmatpush1.bf16.msra.mxu0 0
    %1185 = vmatprep.subr.bf16.mxu0 0
    %1186 = vmatpush1.bf16.msra.mxu0 0
    %1187 = vmatprep.subr.bf16.mxu0 0
    %1188 = vmatpush1.bf16.msra.mxu0 0
    %1189 = vmatprep.subr.bf16.mxu0 0
    %1190 = vmatpush1.bf16.msra.mxu0 0
    %1191 = vmatprep.subr.bf16.mxu0 0
    %1192 = vmatpush1.bf16.msra.mxu0 0
    %1193 = vmatprep.subr.bf16.mxu0 0
    %1194 = vmatpush1.bf16.msra.mxu0 0
    %1195 = vmatprep.subr.bf16.mxu0 0
    %1196 = vmatpush1.bf16.msra.mxu0 0
    %1197 = vmatprep.subr.bf16.mxu0 0
    %1198 = vmatpush1.bf16.msra.mxu0 0
    %1199 = vmatprep.subr.bf16.mxu0 0
    %1200 = vmatpush1.bf16.msra.mxu0 0
    %1201 = vmatprep.mubr.bf16.mxu0 0
    %1202 = vmatmul.mubr.bf16.gmra.mrb[0].mxu0 %v462
    %v1203 = vpop.f32.mrb[0].mxu0
    %v1204 = vadd.f32 %v687, %v1203
    %v1205 = vpop.f32.mrb[0].mxu0
    %v1206 = vadd.f32 %v691, %v1205
    %v1207 = vpop.f32.mrb[0].mxu0
    %v1208 = vadd.f32 %v687, %v1207
    %v1209 = vpop.f32.mrb[0].mxu0
    %v1210 = vadd.f32 %v691, %v1209
    %1211 = vdwg.mxu0
    %v1212 = vmax.f32 %v903, 0.0
    %v1213 = vmax.f32 %v905, 0.0
    %v1214 = vmax.f32 %v946, 0.0
    %v1215 = vmax.f32 %v948, 0.0
    %v1216 = vmax.f32 %v989, 0.0
    %v1217 = vmax.f32 %v991, 0.0
    %v1218 = vmax.f32 %v1032, 0.0
    %v1219 = vmax.f32 %v1034, 0.0
    %v1220 = vmax.f32 %v1075, 0.0
    %v1221 = vmax.f32 %v1077, 0.0
    %v1222 = vmax.f32 %v1118, 0.0
    %v1223 = vmax.f32 %v1120, 0.0
    %v1224 = vmax.f32 %v1161, 0.0
    %v1225 = vmax.f32 %v1163, 0.0
    %v1226 = vmax.f32 %v1204, 0.0
    %v1227 = vmax.f32 %v1206, 0.0
    %v1228 = vmax.f32 %v907, 0.0
    %v1229 = vmax.f32 %v909, 0.0
    %v1230 = vmax.f32 %v950, 0.0
    %v1231 = vmax.f32 %v952, 0.0
    %v1232 = vmax.f32 %v993, 0.0
    %v1233 = vmax.f32 %v995, 0.0
    %v1234 = vmax.f32 %v1036, 0.0
    %v1235 = vmax.f32 %v1038, 0.0
    %v1236 = vmax.f32 %v1079, 0.0
    %v1237 = vmax.f32 %v1081, 0.0
    %v1238 = vmax.f32 %v1122, 0.0
    %v1239 = vmax.f32 %v1124, 0.0
    %v1240 = vmax.f32 %v1165, 0.0
    %v1241 = vmax.f32 %v1167, 0.0
    %v1242 = vmax.f32 %v1208, 0.0
    %v1243 = vmax.f32 %v1210, 0.0
    %v1244 = vpack.c.bf16 %v1228, %v1212
    %v1245 = vpack.c.bf16 %v1229, %v1213
    %v1246 = vpack.c.bf16 %v1230, %v1214
    %v1247 = vpack.c.bf16 %v1231, %v1215
    %v1248 = vpack.c.bf16 %v1232, %v1216
    %v1249 = vpack.c.bf16 %v1233, %v1217
    %v1250 = vpack.c.bf16 %v1234, %v1218
    %v1251 = vpack.c.bf16 %v1235, %v1219
    %v1252 = vpack.c.bf16 %v1236, %v1220
    %v1253 = vpack.c.bf16 %v1237, %v1221
    %v1254 = vpack.c.bf16 %v1238, %v1222
    %v1255 = vpack.c.bf16 %v1239, %v1223
    %v1256 = vpack.c.bf16 %v1240, %v1224
    %v1257 = vpack.c.bf16 %v1241, %v1225
    %v1258 = vpack.c.bf16 %v1242, %v1226
    %v1259 = vpack.c.bf16 %v1243, %v1227
    %v1260 = vmul.bf16 %v1244, %v570
    %v1261 = vmul.bf16 %v1245, %v570
    %v1262 = vmul.bf16 %v1246, %v577
    %v1263 = vmul.bf16 %v1247, %v577
    %v1264 = vadd.bf16 %v1260, %v1262
    %v1265 = vadd.bf16 %v1261, %v1263
    %v1266 = vmul.bf16 %v1248, %v584
    %v1267 = vmul.bf16 %v1249, %v584
    %v1268 = vadd.bf16 %v1264, %v1266
    %v1269 = vadd.bf16 %v1265, %v1267
    %v1270 = vmul.bf16 %v1250, %v591
    %v1271 = vmul.bf16 %v1251, %v591
    %v1272 = vadd.bf16 %v1268, %v1270
    %v1273 = vadd.bf16 %v1269, %v1271
    %v1274 = vmul.bf16 %v1252, %v570
    %v1275 = vmul.bf16 %v1253, %v570
    %v1276 = vmul.bf16 %v1254, %v577
    %v1277 = vmul.bf16 %v1255, %v577
    %v1278 = vadd.bf16 %v1274, %v1276
    %v1279 = vadd.bf16 %v1275, %v1277
    %v1280 = vmul.bf16 %v1256, %v584
    %v1281 = vmul.bf16 %v1257, %v584
    %v1282 = vadd.bf16 %v1278, %v1280
    %v1283 = vadd.bf16 %v1279, %v1281
    %v1284 = vmul.bf16 %v1258, %v591
    %v1285 = vmul.bf16 %v1259, %v591
    %v1286 = vadd.bf16 %v1282, %v1284
    %v1287 = vadd.bf16 %v1283, %v1285
    %v1288 = vld [vmem:[#allocation8] sm:$0xff]
    %v1289 = vld [vmem:[#allocation8 + $0x8] sm:$0xff]
    %v1290 = vld [vmem:[#allocation8 + $0x10] sm:$0xff]
    %v1291 = vld [vmem:[#allocation8 + $0x18] sm:$0xff]
    %v1292 = vld [vmem:[#allocation8 + $0x20] sm:$0xff]
    %v1293 = vld [vmem:[#allocation8 + $0x28] sm:$0xff]
    %v1294 = vld [vmem:[#allocation8 + $0x30] sm:$0xff]
    %v1295 = vld [vmem:[#allocation8 + $0x38] sm:$0xff]
    %v1296 = vld [vmem:[#allocation8 + $0x40] sm:$0xff]
    %v1297 = vld [vmem:[#allocation8 + $0x48] sm:$0xff]
    %v1298 = vld [vmem:[#allocation8 + $0x50] sm:$0xff]
    %v1299 = vld [vmem:[#allocation8 + $0x58] sm:$0xff]
    %v1300 = vld [vmem:[#allocation8 + $0x60] sm:$0xff]
    %v1301 = vld [vmem:[#allocation8 + $0x68] sm:$0xff]
    %v1302 = vld [vmem:[#allocation8 + $0x70] sm:$0xff]
    %v1303 = vld [vmem:[#allocation8 + $0x78] sm:$0xff]
    %v1304 = vld [vmem:[#allocation8 + $0x80] sm:$0xff]
    %v1305 = vld [vmem:[#allocation8 + $0x88] sm:$0xff]
    %v1306 = vld [vmem:[#allocation8 + $0x90] sm:$0xff]
    %v1307 = vld [vmem:[#allocation8 + $0x98] sm:$0xff]
    %v1308 = vld [vmem:[#allocation8 + $0xa0] sm:$0xff]
    %v1309 = vld [vmem:[#allocation8 + $0xa8] sm:$0xff]
    %v1310 = vld [vmem:[#allocation8 + $0xb0] sm:$0xff]
    %v1311 = vld [vmem:[#allocation8 + $0xb8] sm:$0xff]
    %v1312 = vld [vmem:[#allocation8 + $0xc0] sm:$0xff]
    %v1313 = vld [vmem:[#allocation8 + $0xc8] sm:$0xff]
    %v1314 = vld [vmem:[#allocation8 + $0xd0] sm:$0xff]
    %v1315 = vld [vmem:[#allocation8 + $0xd8] sm:$0xff]
    %v1316 = vld [vmem:[#allocation8 + $0xe0] sm:$0xff]
    %v1317 = vld [vmem:[#allocation8 + $0xe8] sm:$0xff]
    %v1318 = vld [vmem:[#allocation8 + $0xf0] sm:$0xff]
    %v1319 = vld [vmem:[#allocation8 + $0xf8] sm:$0xff]
    %v1320 = vld [vmem:[%s10 + $0x14] sm:$0x3]
    %v1322 = vlaneseq
    %v1323 = vshrl.u32 %v1322, 7
    %v1324 = vsub.s32 0, %v1323
    %v1325 = vrot.slane %v1320, %v1324
    %v1326 = vlaneseq
    %v1327 = vshrl.u32 %v1326, 7
    %v1328 = vsub.s32 1, %v1327
    %v1329 = vrot.slane %v1320, %v1328
    %v1364 = vunpack.c.l.b16 %v1288
    %v1365 = vunpack.c.h.b16 %v1288
    %v1366 = vunpack.c.l.b16 %v1289
    %v1367 = vunpack.c.h.b16 %v1289
    %v1368 = vunpack.c.l.b16 %v1290
    %v1369 = vunpack.c.h.b16 %v1290
    %v1370 = vunpack.c.l.b16 %v1291
    %v1371 = vunpack.c.h.b16 %v1291
    %v1372 = vunpack.c.l.b16 %v1292
    %v1373 = vunpack.c.h.b16 %v1292
    %v1374 = vunpack.c.l.b16 %v1293
    %v1375 = vunpack.c.h.b16 %v1293
    %v1376 = vunpack.c.l.b16 %v1294
    %v1377 = vunpack.c.h.b16 %v1294
    %v1378 = vunpack.c.l.b16 %v1295
    %v1379 = vunpack.c.h.b16 %v1295
    %v1380 = vunpack.c.l.b16 %v1296
    %v1381 = vunpack.c.h.b16 %v1296
    %v1382 = vunpack.c.l.b16 %v1297
    %v1383 = vunpack.c.h.b16 %v1297
    %v1384 = vunpack.c.l.b16 %v1298
    %v1385 = vunpack.c.h.b16 %v1298
    %v1386 = vunpack.c.l.b16 %v1299
    %v1387 = vunpack.c.h.b16 %v1299
    %v1388 = vunpack.c.l.b16 %v1300
    %v1389 = vunpack.c.h.b16 %v1300
    %v1390 = vunpack.c.l.b16 %v1301
    %v1391 = vunpack.c.h.b16 %v1301
    %v1392 = vunpack.c.l.b16 %v1302
    %v1393 = vunpack.c.h.b16 %v1302
    %v1394 = vunpack.c.l.b16 %v1303
    %v1395 = vunpack.c.h.b16 %v1303
    %v1396 = vunpack.c.l.b16 %v1304
    %v1397 = vunpack.c.h.b16 %v1304
    %v1398 = vunpack.c.l.b16 %v1305
    %v1399 = vunpack.c.h.b16 %v1305
    %v1400 = vunpack.c.l.b16 %v1306
    %v1401 = vunpack.c.h.b16 %v1306
    %v1402 = vunpack.c.l.b16 %v1307
    %v1403 = vunpack.c.h.b16 %v1307
    %v1404 = vunpack.c.l.b16 %v1308
    %v1405 = vunpack.c.h.b16 %v1308
    %v1406 = vunpack.c.l.b16 %v1309
    %v1407 = vunpack.c.h.b16 %v1309
    %v1408 = vunpack.c.l.b16 %v1310
    %v1409 = vunpack.c.h.b16 %v1310
    %v1410 = vunpack.c.l.b16 %v1311
    %v1411 = vunpack.c.h.b16 %v1311
    %v1412 = vunpack.c.l.b16 %v1312
    %v1413 = vunpack.c.h.b16 %v1312
    %v1414 = vunpack.c.l.b16 %v1313
    %v1415 = vunpack.c.h.b16 %v1313
    %v1416 = vunpack.c.l.b16 %v1314
    %v1417 = vunpack.c.h.b16 %v1314
    %v1418 = vunpack.c.l.b16 %v1315
    %v1419 = vunpack.c.h.b16 %v1315
    %v1420 = vunpack.c.l.b16 %v1316
    %v1421 = vunpack.c.h.b16 %v1316
    %v1422 = vunpack.c.l.b16 %v1317
    %v1423 = vunpack.c.h.b16 %v1317
    %v1424 = vunpack.c.l.b16 %v1318
    %v1425 = vunpack.c.h.b16 %v1318
    %v1426 = vunpack.c.l.b16 %v1319
    %v1427 = vunpack.c.h.b16 %v1319
    %v1428 = vpack.c.b16 %v1366, %v1364
    %v1429 = vpack.c.b16 %v1367, %v1365
    %v1430 = vpack.c.b16 %v1370, %v1368
    %v1431 = vpack.c.b16 %v1371, %v1369
    %v1432 = vpack.c.b16 %v1374, %v1372
    %v1433 = vpack.c.b16 %v1375, %v1373
    %v1434 = vpack.c.b16 %v1378, %v1376
    %v1435 = vpack.c.b16 %v1379, %v1377
    %v1436 = vpack.c.b16 %v1382, %v1380
    %v1437 = vpack.c.b16 %v1383, %v1381
    %v1438 = vpack.c.b16 %v1386, %v1384
    %v1439 = vpack.c.b16 %v1387, %v1385
    %v1440 = vpack.c.b16 %v1390, %v1388
    %v1441 = vpack.c.b16 %v1391, %v1389
    %v1442 = vpack.c.b16 %v1394, %v1392
    %v1443 = vpack.c.b16 %v1395, %v1393
    %v1444 = vpack.c.b16 %v1398, %v1396
    %v1445 = vpack.c.b16 %v1399, %v1397
    %v1446 = vpack.c.b16 %v1402, %v1400
    %v1447 = vpack.c.b16 %v1403, %v1401
    %v1448 = vpack.c.b16 %v1406, %v1404
    %v1449 = vpack.c.b16 %v1407, %v1405
    %v1450 = vpack.c.b16 %v1410, %v1408
    %v1451 = vpack.c.b16 %v1411, %v1409
    %v1452 = vpack.c.b16 %v1414, %v1412
    %v1453 = vpack.c.b16 %v1415, %v1413
    %v1454 = vpack.c.b16 %v1418, %v1416
    %v1455 = vpack.c.b16 %v1419, %v1417
    %v1456 = vpack.c.b16 %v1422, %v1420
    %v1457 = vpack.c.b16 %v1423, %v1421
    %v1458 = vpack.c.b16 %v1426, %v1424
    %v1459 = vpack.c.b16 %v1427, %v1425
    %1492 = vmatprep.subr.bf16.mxu0 %v1429
    %1493 = vmatpush1.bf16.msra.mxu0 %v1428
    %1494 = vmatprep.subr.bf16.mxu0 %v1431
    %1495 = vmatpush1.bf16.msra.mxu0 %v1430
    %1496 = vmatprep.subr.bf16.mxu0 %v1433
    %1497 = vmatpush1.bf16.msra.mxu0 %v1432
    %1498 = vmatprep.subr.bf16.mxu0 %v1435
    %1499 = vmatpush1.bf16.msra.mxu0 %v1434
    %1500 = vmatprep.subr.bf16.mxu0 %v1437
    %1501 = vmatpush1.bf16.msra.mxu0 %v1436
    %1502 = vmatprep.subr.bf16.mxu0 %v1439
    %1503 = vmatpush1.bf16.msra.mxu0 %v1438
    %1504 = vmatprep.subr.bf16.mxu0 %v1441
    %1505 = vmatpush1.bf16.msra.mxu0 %v1440
    %1506 = vmatprep.subr.bf16.mxu0 %v1443
    %1507 = vmatpush1.bf16.msra.mxu0 %v1442
    %1508 = vmatprep.subr.bf16.mxu0 %v1445
    %1509 = vmatpush1.bf16.msra.mxu0 %v1444
    %1510 = vmatprep.subr.bf16.mxu0 %v1447
    %1511 = vmatpush1.bf16.msra.mxu0 %v1446
    %1512 = vmatprep.subr.bf16.mxu0 %v1449
    %1513 = vmatpush1.bf16.msra.mxu0 %v1448
    %1514 = vmatprep.subr.bf16.mxu0 %v1451
    %1515 = vmatpush1.bf16.msra.mxu0 %v1450
    %1516 = vmatprep.subr.bf16.mxu0 %v1453
    %1517 = vmatpush1.bf16.msra.mxu0 %v1452
    %1518 = vmatprep.subr.bf16.mxu0 %v1455
    %1519 = vmatpush1.bf16.msra.mxu0 %v1454
    %1520 = vmatprep.subr.bf16.mxu0 %v1457
    %1521 = vmatpush1.bf16.msra.mxu0 %v1456
    %1522 = vmatprep.subr.bf16.mxu0 %v1459
    %1523 = vmatpush1.bf16.msra.mxu0 %v1458
    %1524 = vmatprep.mubr.bf16.mxu0 %v1273
    %1525 = vmatmul.mubr.bf16.gmra.mrb[0].mxu0 %v1272
    %v1526 = vpop.f32.mrb[0].mxu0
    %v1527 = vadd.f32 %v1325, %v1526
    %v1528 = vpop.f32.mrb[0].mxu0
    %v1529 = vadd.f32 %v1329, %v1528
    %v1530 = vpop.f32.mrb[0].mxu0
    %v1531 = vadd.f32 %v1325, %v1530
    %v1532 = vpop.f32.mrb[0].mxu0
    %v1533 = vadd.f32 %v1329, %v1532
    %1534 = vdwg.mxu0
    %v1535 = vmax.f32 %v1527, 0.0
    %v1536 = vmax.f32 %v1529, 0.0
    %v1537 = vmax.f32 %v1531, 0.0
    %v1538 = vmax.f32 %v1533, 0.0
    %v1539 = vpack.c.bf16 %v1537, %v1535
    %v1540 = vpack.c.bf16 %v1538, %v1536
    %v1541 = vmul.bf16 %v1539, %v570
    %v1542 = vmul.bf16 %v1539, %v577
    %1544 = vrot.lane.b32.xlu0 %v1542, 64
    %v1545 = vpop.permute.xlu0 %1544
    %v1547 = vadd.bf16 %v1541, %v1545
    %v1548 = vmul.bf16 %v1540, %v584
    %v1549 = vadd.bf16 %v1547, %v1548
    %v1550 = vmul.bf16 %v1540, %v591
    %1552 = vrot.lane.b32.xlu0 %v1550, 64
    %v1553 = vpop.permute.xlu0 %1552
    %v1555 = vadd.bf16 %v1549, %v1553
    %v1556 = vld [vmem:[%s7] sm:$0xf]
    %v1557 = vld [vmem:[%s7 + $0x4] sm:$0xf]
    %v1558 = vld [vmem:[%s7 + $0x8] sm:$0xf]
    %v1559 = vld [vmem:[%s7 + $0xc] sm:$0xf]
    %v1560 = vld [vmem:[%s7 + $0x10] sm:$0xf]
    %v1561 = vld [vmem:[%s7 + $0x14] sm:$0xf]
    %v1562 = vld [vmem:[%s7 + $0x18] sm:$0xf]
    %v1563 = vld [vmem:[%s7 + $0x1c] sm:$0xf]
    %v1564 = vld [vmem:[%s10 + $0x16] sm:$0x1]
    %v1566 = vlaneseq
    %v1567 = vshrl.u32 %v1566, 7
    %v1568 = vsub.s32 0, %v1567
    %v1569 = vrot.slane %v1564, %v1568
    %v1579 = vunpack.c.l.b16 %v1556
    %v1580 = vunpack.c.l.b16 %v1557
    %v1581 = vunpack.c.l.b16 %v1558
    %v1582 = vunpack.c.l.b16 %v1559
    %v1583 = vunpack.c.l.b16 %v1560
    %v1584 = vunpack.c.l.b16 %v1561
    %v1585 = vunpack.c.l.b16 %v1562
    %v1586 = vunpack.c.l.b16 %v1563
    %v1587 = vpack.c.b16 %v1580, %v1579
    %v1588 = vpack.c.b16 %v1582, %v1581
    %v1589 = vpack.c.b16 %v1584, %v1583
    %v1590 = vpack.c.b16 %v1586, %v1585
    %vm1595 = vcmask 523264
    %v1597 = vsel %vm1595, %v1555, 0
    %1599 = vmatprep.subr.bf16.mxu0 0
    %1600 = vmatpush1.bf16.msra.mxu0 %v1587
    %1601 = vmatprep.subr.bf16.mxu0 0
    %1602 = vmatpush1.bf16.msra.mxu0 %v1588
    %1603 = vmatprep.subr.bf16.mxu0 0
    %1604 = vmatpush1.bf16.msra.mxu0 %v1589
    %1605 = vmatprep.subr.bf16.mxu0 0
    %1606 = vmatpush1.bf16.msra.mxu0 %v1590
    %1607 = vmatprep.subr.bf16.mxu0 0
    %1608 = vmatpush1.bf16.msra.mxu0 0
    %1609 = vmatprep.subr.bf16.mxu0 0
    %1610 = vmatpush1.bf16.msra.mxu0 0
    %1611 = vmatprep.subr.bf16.mxu0 0
    %1612 = vmatpush1.bf16.msra.mxu0 0
    %1613 = vmatprep.subr.bf16.mxu0 0
    %1614 = vmatpush1.bf16.msra.mxu0 0
    %1615 = vmatprep.subr.bf16.mxu0 0
    %1616 = vmatpush1.bf16.msra.mxu0 0
    %1617 = vmatprep.subr.bf16.mxu0 0
    %1618 = vmatpush1.bf16.msra.mxu0 0
    %1619 = vmatprep.subr.bf16.mxu0 0
    %1620 = vmatpush1.bf16.msra.mxu0 0
    %1621 = vmatprep.subr.bf16.mxu0 0
    %1622 = vmatpush1.bf16.msra.mxu0 0
    %1623 = vmatprep.subr.bf16.mxu0 0
    %1624 = vmatpush1.bf16.msra.mxu0 0
    %1625 = vmatprep.subr.bf16.mxu0 0
    %1626 = vmatpush1.bf16.msra.mxu0 0
    %1627 = vmatprep.subr.bf16.mxu0 0
    %1628 = vmatpush1.bf16.msra.mxu0 0
    %1629 = vmatprep.subr.bf16.mxu0 0
    %1630 = vmatpush1.bf16.msra.mxu0 0
    %1631 = vmatprep.mubr.bf16.mxu0 0
    %1632 = vmatmul.mubr.bf16.gmra.mrb[0].mxu0 %v1597
    %v1633 = vpop.f32.mrb[0].mxu0
    %v1634 = vadd.f32 %v1569, %v1633
    %v1635 = vpop.f32.mrb[0].mxu0
    %v1636 = vpop.f32.mrb[0].mxu0
    %v1637 = vadd.f32 %v1569, %v1636
    %v1638 = vpop.f32.mrb[0].mxu0
    %1639 = vdwg.mxu0
    %v1640 = vmax.f32 %v1634, 0.0
    %v1641 = vmax.f32 %v1637, 0.0
    %v1642 = vpack.c.bf16 %v1641, %v1640
    %v1643 = vmul.bf16 %v1642, %v570
    %v1644 = vmul.bf16 %v1642, %v577
    %1646 = vrot.lane.b32.xlu0 %v1644, 96
    %v1647 = vpop.permute.xlu0 %1646
    %v1649 = vadd.bf16 %v1643, %v1647
    %v1650 = vmul.bf16 %v1642, %v584
    %1652 = vrot.lane.b32.xlu0 %v1650, 64
    %v1653 = vpop.permute.xlu0 %1652
    %v1655 = vadd.bf16 %v1649, %v1653
    %v1656 = vmul.bf16 %v1642, %v591
    %1658 = vrot.lane.b32.xlu0 %v1656, 32
    %v1659 = vpop.permute.xlu0 %1658
    %v1661 = vadd.bf16 %v1655, %v1659
    %v1662 = vld [vmem:[#allocation10] sm:$0xf]
    %v1663 = vld [vmem:[#allocation10 + $0x4] sm:$0xf]
    %v1664 = vld [vmem:[#allocation10 + $0x8] sm:$0xf]
    %v1665 = vld [vmem:[#allocation10 + $0xc] sm:$0xf]
    %v1666 = vld [vmem:[%s10 + $0x17] sm:$0x1]
    %v1668 = vlaneseq
    %v1669 = vshrl.u32 %v1668, 7
    %v1670 = vsub.s32 0, %v1669
    %v1671 = vrot.slane %v1666, %v1670
    %v1677 = vunpack.c.l.b16 %v1662
    %v1678 = vunpack.c.l.b16 %v1663
    %v1679 = vunpack.c.l.b16 %v1664
    %v1680 = vunpack.c.l.b16 %v1665
    %v1681 = vpack.c.b16 %v1678, %v1677
    %v1682 = vpack.c.b16 %v1680, %v1679
    %v1686 = vsel %vm320, %v1661, 0
    %1688 = vmatprep.subr.bf16.mxu0 0
    %1689 = vmatpush1.bf16.msra.mxu0 %v1681
    %1690 = vmatprep.subr.bf16.mxu0 0
    %1691 = vmatpush1.bf16.msra.mxu0 %v1682
    %1692 = vmatprep.subr.bf16.mxu0 0
    %1693 = vmatpush1.bf16.msra.mxu0 0
    %1694 = vmatprep.subr.bf16.mxu0 0
    %1695 = vmatpush1.bf16.msra.mxu0 0
    %1696 = vmatprep.subr.bf16.mxu0 0
    %1697 = vmatpush1.bf16.msra.mxu0 0
    %1698 = vmatprep.subr.bf16.mxu0 0
    %1699 = vmatpush1.bf16.msra.mxu0 0
    %1700 = vmatprep.subr.bf16.mxu0 0
    %1701 = vmatpush1.bf16.msra.mxu0 0
    %1702 = vmatprep.subr.bf16.mxu0 0
    %1703 = vmatpush1.bf16.msra.mxu0 0
    %1704 = vmatprep.subr.bf16.mxu0 0
    %1705 = vmatpush1.bf16.msra.mxu0 0
    %1706 = vmatprep.subr.bf16.mxu0 0
    %1707 = vmatpush1.bf16.msra.mxu0 0
    %1708 = vmatprep.subr.bf16.mxu0 0
    %1709 = vmatpush1.bf16.msra.mxu0 0
    %1710 = vmatprep.subr.bf16.mxu0 0
    %1711 = vmatpush1.bf16.msra.mxu0 0
    %1712 = vmatprep.subr.bf16.mxu0 0
    %1713 = vmatpush1.bf16.msra.mxu0 0
    %1714 = vmatprep.subr.bf16.mxu0 0
    %1715 = vmatpush1.bf16.msra.mxu0 0
    %1716 = vmatprep.subr.bf16.mxu0 0
    %1717 = vmatpush1.bf16.msra.mxu0 0
    %1718 = vmatprep.subr.bf16.mxu0 0
    %1719 = vmatpush1.bf16.msra.mxu0 0
    %1720 = vmatprep.mubr.bf16.mxu0 0
    %1721 = vmatmul.mubr.bf16.gmra.mrb[0].mxu0 %v1686
    %v1722 = vpop.f32.mrb[0].mxu0
    %v1723 = vadd.f32 %v1671, %v1722
    %v1724 = vpop.f32.mrb[0].mxu0
    %v1725 = vpop.f32.mrb[0].mxu0
    %v1726 = vadd.f32 %v1671, %v1725
    %v1727 = vpop.f32.mrb[0].mxu0
    %1728 = vdwg.mxu0
    %v1729 = vmul.f32 %v1723, %v568
    %v1730 = vmul.f32 %v1726, %v569
    %v1731 = vmul.f32 %v1723, %v575
    %v1732 = vmul.f32 %v1726, %v576
    %1735 = vrot.lane.b32.xlu0 %v1731, 96
    %v1736 = vpop.permute.xlu0 %1735
    %1737 = vrot.lane.b32.xlu0 %v1732, 96
    %v1738 = vpop.permute.xlu0 %1737
    %v1741 = vadd.f32 %v1729, %v1736
    %v1742 = vadd.f32 %v1730, %v1738
    %v1743 = vmul.f32 %v1723, %v582
    %v1744 = vmul.f32 %v1726, %v583
    %1747 = vrot.lane.b32.xlu0 %v1743, 64
    %v1748 = vpop.permute.xlu0 %1747
    %1749 = vrot.lane.b32.xlu0 %v1744, 64
    %v1750 = vpop.permute.xlu0 %1749
    %v1753 = vadd.f32 %v1741, %v1748
    %v1754 = vadd.f32 %v1742, %v1750
    %v1755 = vmul.f32 %v1723, %v589
    %v1756 = vmul.f32 %v1726, %v590
    %1759 = vrot.lane.b32.xlu0 %v1755, 32
    %v1760 = vpop.permute.xlu0 %1759
    %1761 = vrot.lane.b32.xlu0 %v1756, 32
    %v1762 = vpop.permute.xlu0 %1761
    %v1765 = vadd.f32 %v1753, %v1760
    %v1766 = vadd.f32 %v1754, %v1762
    %v1767 = vld [vmem:[%s9] sm:$0xf]
    %v1768 = vld [vmem:[%s9 + $0x4] sm:$0xf]
    %v1769 = vld [vmem:[%s9 + $0x8] sm:$0xf]
    %v1770 = vld [vmem:[%s9 + $0xc] sm:$0xf]
    %v1771 = vld [vmem:[%s9 + $0x10] sm:$0xf]
    %v1772 = vld [vmem:[%s9 + $0x14] sm:$0xf]
    %v1773 = vld [vmem:[%s9 + $0x18] sm:$0xf]
    %v1774 = vld [vmem:[%s9 + $0x1c] sm:$0xf]
    %v1775 = vld [vmem:[%s9 + $0x20] sm:$0xf]
    %v1776 = vld [vmem:[%s9 + $0x24] sm:$0xf]
    %v1777 = vld [vmem:[%s9 + $0x28] sm:$0xf]
    %v1778 = vld [vmem:[%s9 + $0x2c] sm:$0xf]
    %v1779 = vld [vmem:[%s9 + $0x30] sm:$0xf]
    %v1780 = vld [vmem:[%s9 + $0x34] sm:$0xf]
    %v1781 = vld [vmem:[%s9 + $0x38] sm:$0xf]
    %v1782 = vld [vmem:[%s9 + $0x3c] sm:$0xf]
    %v1783 = vld [vmem:[%s9 + $0x40] sm:$0xf]
    %v1784 = vld [vmem:[%s9 + $0x44] sm:$0xf]
    %v1785 = vld [vmem:[%s9 + $0x48] sm:$0xf]
    %v1786 = vld [vmem:[%s9 + $0x4c] sm:$0xf]
    %v1787 = vld [vmem:[%s9 + $0x50] sm:$0xf]
    %v1788 = vld [vmem:[%s9 + $0x54] sm:$0xf]
    %v1789 = vld [vmem:[%s9 + $0x58] sm:$0xf]
    %v1790 = vld [vmem:[%s9 + $0x5c] sm:$0xf]
    %v1791 = vld [vmem:[%s9 + $0x60] sm:$0xf]
    %v1792 = vld [vmem:[%s9 + $0x64] sm:$0xf]
    %v1793 = vld [vmem:[%s9 + $0x68] sm:$0xf]
    %v1794 = vld [vmem:[%s9 + $0x6c] sm:$0xf]
    %v1795 = vld [vmem:[%s9 + $0x70] sm:$0xf]
    %v1796 = vld [vmem:[%s9 + $0x74] sm:$0xf]
    %v1797 = vld [vmem:[%s9 + $0x78] sm:$0xf]
    %v1798 = vld [vmem:[%s9 + $0x7c] sm:$0xf]
    %v1799 = vld [vmem:[%s10 + $0x18] sm:$0x1]
    %v1801 = vlaneseq
    %v1802 = vshrl.u32 %v1801, 7
    %v1803 = vsub.s32 0, %v1802
    %v1804 = vrot.slane %v1799, %v1803
    %v1838 = vunpack.c.l.b16 %v1767
    %v1839 = vunpack.c.l.b16 %v1768
    %v1840 = vunpack.c.l.b16 %v1769
    %v1841 = vunpack.c.l.b16 %v1770
    %v1842 = vunpack.c.l.b16 %v1771
    %v1843 = vunpack.c.l.b16 %v1772
    %v1844 = vunpack.c.l.b16 %v1773
    %v1845 = vunpack.c.l.b16 %v1774
    %v1846 = vunpack.c.l.b16 %v1775
    %v1847 = vunpack.c.l.b16 %v1776
    %v1848 = vunpack.c.l.b16 %v1777
    %v1849 = vunpack.c.l.b16 %v1778
    %v1850 = vunpack.c.l.b16 %v1779
    %v1851 = vunpack.c.l.b16 %v1780
    %v1852 = vunpack.c.l.b16 %v1781
    %v1853 = vunpack.c.l.b16 %v1782
    %v1854 = vunpack.c.l.b16 %v1783
    %v1855 = vunpack.c.l.b16 %v1784
    %v1856 = vunpack.c.l.b16 %v1785
    %v1857 = vunpack.c.l.b16 %v1786
    %v1858 = vunpack.c.l.b16 %v1787
    %v1859 = vunpack.c.l.b16 %v1788
    %v1860 = vunpack.c.l.b16 %v1789
    %v1861 = vunpack.c.l.b16 %v1790
    %v1862 = vunpack.c.l.b16 %v1791
    %v1863 = vunpack.c.l.b16 %v1792
    %v1864 = vunpack.c.l.b16 %v1793
    %v1865 = vunpack.c.l.b16 %v1794
    %v1866 = vunpack.c.l.b16 %v1795
    %v1867 = vunpack.c.l.b16 %v1796
    %v1868 = vunpack.c.l.b16 %v1797
    %v1869 = vunpack.c.l.b16 %v1798
    %v1870 = vpack.c.b16 %v1839, %v1838
    %v1871 = vpack.c.b16 %v1841, %v1840
    %v1872 = vpack.c.b16 %v1843, %v1842
    %v1873 = vpack.c.b16 %v1845, %v1844
    %v1874 = vpack.c.b16 %v1847, %v1846
    %v1875 = vpack.c.b16 %v1849, %v1848
    %v1876 = vpack.c.b16 %v1851, %v1850
    %v1877 = vpack.c.b16 %v1853, %v1852
    %v1878 = vpack.c.b16 %v1855, %v1854
    %v1879 = vpack.c.b16 %v1857, %v1856
    %v1880 = vpack.c.b16 %v1859, %v1858
    %v1881 = vpack.c.b16 %v1861, %v1860
    %v1882 = vpack.c.b16 %v1863, %v1862
    %v1883 = vpack.c.b16 %v1865, %v1864
    %v1884 = vpack.c.b16 %v1867, %v1866
    %v1885 = vpack.c.b16 %v1869, %v1868
    %1902 = vmatprep.subr.bf16.mxu0 0
    %1903 = vmatpush1.bf16.msra.mxu0 %v1870
    %1904 = vmatprep.subr.bf16.mxu0 0
    %1905 = vmatpush1.bf16.msra.mxu0 %v1871
    %1906 = vmatprep.subr.bf16.mxu0 0
    %1907 = vmatpush1.bf16.msra.mxu0 %v1872
    %1908 = vmatprep.subr.bf16.mxu0 0
    %1909 = vmatpush1.bf16.msra.mxu0 %v1873
    %1910 = vmatprep.subr.bf16.mxu0 0
    %1911 = vmatpush1.bf16.msra.mxu0 %v1874
    %1912 = vmatprep.subr.bf16.mxu0 0
    %1913 = vmatpush1.bf16.msra.mxu0 %v1875
    %1914 = vmatprep.subr.bf16.mxu0 0
    %1915 = vmatpush1.bf16.msra.mxu0 %v1876
    %1916 = vmatprep.subr.bf16.mxu0 0
    %1917 = vmatpush1.bf16.msra.mxu0 %v1877
    %1918 = vmatprep.subr.bf16.mxu0 0
    %1919 = vmatpush1.bf16.msra.mxu0 %v1878
    %1920 = vmatprep.subr.bf16.mxu0 0
    %1921 = vmatpush1.bf16.msra.mxu0 %v1879
    %1922 = vmatprep.subr.bf16.mxu0 0
    %1923 = vmatpush1.bf16.msra.mxu0 %v1880
    %1924 = vmatprep.subr.bf16.mxu0 0
    %1925 = vmatpush1.bf16.msra.mxu0 %v1881
    %1926 = vmatprep.subr.bf16.mxu0 0
    %1927 = vmatpush1.bf16.msra.mxu0 %v1882
    %1928 = vmatprep.subr.bf16.mxu0 0
    %1929 = vmatpush1.bf16.msra.mxu0 %v1883
    %1930 = vmatprep.subr.bf16.mxu0 0
    %1931 = vmatpush1.bf16.msra.mxu0 %v1884
    %1932 = vmatprep.subr.bf16.mxu0 0
    %1933 = vmatpush1.bf16.msra.mxu0 %v1885
    %1934 = vmatprep.mubr.bf16.mxu0 %v1287
    %1935 = vmatmul.mubr.bf16.gmra.mrb[0].mxu0 %v1286
    %v1936 = vpop.f32.mrb[0].mxu0
    %v1937 = vadd.f32 %v1804, %v1936
    %v1938 = vpop.f32.mrb[0].mxu0
    %v1939 = vpop.f32.mrb[0].mxu0
    %v1940 = vadd.f32 %v1804, %v1939
    %v1941 = vpop.f32.mrb[0].mxu0
    %1942 = vdwg.mxu0
    %v1943 = vmul.f32 %v1937, %v568
    %v1944 = vmul.f32 %v1940, %v569
    %v1945 = vmul.f32 %v1937, %v575
    %v1946 = vmul.f32 %v1940, %v576
    %1949 = vrot.lane.b32.xlu0 %v1945, 96
    %v1950 = vpop.permute.xlu0 %1949
    %1951 = vrot.lane.b32.xlu0 %v1946, 96
    %v1952 = vpop.permute.xlu0 %1951
    %v1955 = vadd.f32 %v1943, %v1950
    %v1956 = vadd.f32 %v1944, %v1952
    %v1957 = vmul.f32 %v1937, %v582
    %v1958 = vmul.f32 %v1940, %v583
    %1961 = vrot.lane.b32.xlu0 %v1957, 64
    %v1962 = vpop.permute.xlu0 %1961
    %1963 = vrot.lane.b32.xlu0 %v1958, 64
    %v1964 = vpop.permute.xlu0 %1963
    %v1967 = vadd.f32 %v1955, %v1962
    %v1968 = vadd.f32 %v1956, %v1964
    %v1969 = vmul.f32 %v1937, %v589
    %v1970 = vmul.f32 %v1940, %v590
    %1973 = vrot.lane.b32.xlu0 %v1969, 32
    %v1974 = vpop.permute.xlu0 %1973
    %1975 = vrot.lane.b32.xlu0 %v1970, 32
    %v1976 = vpop.permute.xlu0 %1975
    %v1979 = vadd.f32 %v1967, %v1974
    %v1980 = vadd.f32 %v1968, %v1976
    %v1981 = vsel %vm505, %v526, 0.0
    %v1982 = vsel %vm505, %v527, 0.0
    %v1983 = vunpack.c.l.bf16 %v437
    %v1984 = vunpack.c.h.bf16 %v437
    %1987 = vrot.lane.b32.xlu0 %v1981, 32
    %v1988 = vpop.permute.xlu0 %1987
    %1989 = vrot.lane.b32.xlu0 %v1982, 32
    %v1990 = vpop.permute.xlu0 %1989
    %1995 = vrot.lane.b32.xlu0 %v1765, 64
    %v1996 = vpop.permute.xlu0 %1995
    %1997 = vrot.lane.b32.xlu0 %v1766, 64
    %v1998 = vpop.permute.xlu0 %1997
    %2003 = vrot.lane.b32.xlu0 %v1979, 96
    %v2004 = vpop.permute.xlu0 %2003
    %2005 = vrot.lane.b32.xlu0 %v1980, 96
    %v2006 = vpop.permute.xlu0 %2005
    %v2009 = vsel %vm320, %v1983, %v1988
    %v2010 = vsel %vm320, %v1984, %v1990
    %v2011 = vsel %vm1595, %v2009, %v1996
    %v2012 = vsel %vm1595, %v2010, %v1998
    %vm2013 = vcmask 785408
    %v2014 = vsel %vm2013, %v2011, %v2004
    %v2015 = vsel %vm2013, %v2012, %v2006
    %2016 = vst [vmem:[#allocation11] sm:$0xff] %v2014
    %2017 = vst [vmem:[#allocation11 + $0x8] sm:$0xff] %v2015
    // Predicated region
    $region66: #{tpu_custom_call.1} parent=1 // pred_check
      _
    $region67: #{tpu_custom_call.1} parent=1 // pred_check_branch
      %2019 = sbr.rel (0) target = $region69
    $region68: #{tpu_custom_call.1} parent=1 // pred_region
      %s2021 = ssub.s32 256, 256
      %2022 = vsyncadd [#allocation4], %s2021
      %s2023 = sshll.u32 [#allocation11], 4
      %s2024 = int_to_ptr.vmem [resolvable:$true] %s2023
      %2029 = dma.vmem_to_hbm [thread:$0]  %s2024, 256, %s11, [#allocation4], 128, 128, 8
    $region69: #{tpu_custom_call.1} parent=1 // pred_fallthru
      _
    // Predicated region
    $region70: #{tpu_custom_call.1} parent=1 // pred_check
      _
    $region71: #{tpu_custom_call.1} parent=1 // pred_check_branch
      %2031 = sbr.rel (0) target = $region73
    $region72: #{tpu_custom_call.1} parent=1 // pred_region
      %2032 = dma.done [#allocation4], 256
    $region73: #{tpu_custom_call.1} parent=1 // pred_fallthru
      _
    %2033 = vsyncpa [#allocation3], 1
    %2034 = vsyncpa [#allocation6], 1
    %2035 = vsyncpa [#allocation9], 1
    %2036 = vsyncpa [#allocation4], 1

</llo_original>
